<compile_context>
chip_gen: v5e
topology: v5e:2x2
jax: 0.10.0
libtpu: 0.0.40
codegen_flags: <defaults>
</compile_context>

<pallas_src>
import functools
from math import sqrt

import jax
import jax.numpy as jnp
from jax import lax
from jax.experimental import pallas as pl
from jax.experimental.pallas import tpu as pltpu

_EPS = 1e-5


def _vmem_limit_bytes():
    """Half of physical VMEM, clamped to [32 MiB, 96 MiB] (48 MiB fallback)."""
    try:
        cap = getattr(pltpu.get_tpu_info(), "vmem_capacity_bytes", None)
        if cap is None:
            return 48 * 1024 * 1024
        return int(min(96 * 1024 * 1024, max(32 * 1024 * 1024, cap // 2)))
    except Exception:
        return 48 * 1024 * 1024


_VMEM_LIMIT = _vmem_limit_bytes()


def _pick_tile(dim, target, quantum):
    """Largest tile <= target that divides dim and is a multiple of `quantum`;
    falls back to the full dim (full-extent blocks always satisfy tiling rules)."""
    if dim <= target:
        return dim
    t = (target // quantum) * quantum
    while t >= quantum:
        if dim % t == 0:
            return t
        t -= quantum
    return dim


# ----------------------------------------------------------------------------
# 1) Tiled matmul + bias (fused QKV projection), bf16 in / bf16 out, f32 acc
# ----------------------------------------------------------------------------
def _matmul_bias_kernel(x_ref, w_ref, b_ref, o_ref, acc_ref):
    @pl.when(pl.program_id(2) == 0)
    def _():
        acc_ref[...] = jnp.zeros_like(acc_ref)

    acc_ref[...] += jnp.dot(x_ref[...], w_ref[...],
                            preferred_element_type=jnp.float32)

    @pl.when(pl.program_id(2) == pl.num_programs(2) - 1)
    def _():
        o_ref[...] = (acc_ref[...] + b_ref[...]).astype(o_ref.dtype)


def matmul_bias(x2d, w, b):
    """y = x2d @ w + b.  x2d: (M, K) bf16, w: (K, N) bf16, b: (N,) f32 -> bf16."""
    M, K = x2d.shape
    _, N = w.shape
    tm = _pick_tile(M, 512, 8)
    tn = _pick_tile(N, 512, 128)
    tk = _pick_tile(K, 512, 128)
    flops = 2 * M * N * K
    bytes_accessed = M * K * 2 + K * N * 2 + M * N * 2 + N * 4
    return pl.pallas_call(
        _matmul_bias_kernel,
        out_shape=jax.ShapeDtypeStruct((M, N), jnp.bfloat16),
        grid=(M // tm, N // tn, K // tk),
        in_specs=[
            pl.BlockSpec((tm, tk), lambda i, j, k: (i, k)),
            pl.BlockSpec((tk, tn), lambda i, j, k: (k, j)),
            pl.BlockSpec((1, tn), lambda i, j, k: (0, j)),
        ],
        out_specs=pl.BlockSpec((tm, tn), lambda i, j, k: (i, j)),
        scratch_shapes=[pltpu.VMEM((tm, tn), jnp.float32)],
        compiler_params=pltpu.CompilerParams(
            dimension_semantics=("parallel", "parallel", "arbitrary"),
            vmem_limit_bytes=_VMEM_LIMIT),
        cost_estimate=pl.CostEstimate(flops=flops, transcendentals=0,
                                      bytes_accessed=bytes_accessed),
    )(x2d, w, b.reshape(1, N))


# ----------------------------------------------------------------------------
# 2) Flash-style multi-head attention: grid (B, H, Lq/tq, Lk/tk), online softmax
#    (1/sqrt(E) scale is already folded into W_q, so q is pre-scaled.)
# ----------------------------------------------------------------------------
def _flash_attn_kernel(q_ref, k_ref, v_ref, o_ref, m_sc, l_sc, acc_sc):
    kv = pl.program_id(3)

    @pl.when(kv == 0)
    def _():
        m_sc[...] = jnp.full_like(m_sc, -jnp.inf)
        l_sc[...] = jnp.zeros_like(l_sc)
        acc_sc[...] = jnp.zeros_like(acc_sc)

    q = q_ref[...][0, 0]                       # (tq, E) bf16 (pre-scaled)
    k = k_ref[...][0, 0]                       # (tk, E) bf16
    v = v_ref[...][0, 0]                       # (tk, E) bf16
    s = lax.dot_general(q, k, (((1,), (1,)), ((), ())),
                        preferred_element_type=jnp.float32)   # (tq, tk)
    m_new = jnp.maximum(m_sc[...], jnp.max(s, axis=-1, keepdims=True))
    alpha = jnp.exp(m_sc[...] - m_new)
    p = jnp.exp(s - m_new)
    l_sc[...] = alpha * l_sc[...] + jnp.sum(p, axis=-1, keepdims=True)
    acc_sc[...] = alpha * acc_sc[...] + jnp.dot(p.astype(jnp.bfloat16), v,
                                                preferred_element_type=jnp.float32)
    m_sc[...] = m_new

    @pl.when(kv == pl.num_programs(3) - 1)
    def _():
        out = (acc_sc[...] / l_sc[...]).astype(o_ref.dtype)
        o_ref[...] = out[None, None]


def flash_attention(q, k, v):
    """q, k, v: (B, H, L, E) bf16 -> context (B, H, L, E) bf16."""
    B, H, L, E = q.shape
    tq = _pick_tile(L, 256, 8)
    tk = _pick_tile(L, 512, 128)     # large kv tiles keep the 256x256 MXU full
    qkv_spec_q = pl.BlockSpec((1, 1, tq, E), lambda b, h, qi, ki: (b, h, qi, 0))
    qkv_spec_k = pl.BlockSpec((1, 1, tk, E), lambda b, h, qi, ki: (b, h, ki, 0))
    return pl.pallas_call(
        _flash_attn_kernel,
        out_shape=jax.ShapeDtypeStruct((B, H, L, E), jnp.bfloat16),
        grid=(B, H, L // tq, L // tk),
        in_specs=[qkv_spec_q, qkv_spec_k, qkv_spec_k],
        out_specs=pl.BlockSpec((1, 1, tq, E), lambda b, h, qi, ki: (b, h, qi, 0)),
        scratch_shapes=[pltpu.VMEM((tq, 1), jnp.float32),
                        pltpu.VMEM((tq, 1), jnp.float32),
                        pltpu.VMEM((tq, E), jnp.float32)],
        compiler_params=pltpu.CompilerParams(
            dimension_semantics=("parallel", "parallel", "parallel", "arbitrary"),
            vmem_limit_bytes=_VMEM_LIMIT),
    )(q, k, v)


# ----------------------------------------------------------------------------
# 2b) Optional attention-weights map (only when output_attention=True), bf16.
# ----------------------------------------------------------------------------
def _attn_map_kernel(q_ref, k_ref, a_ref):
    q = q_ref[...][0, 0]                       # (tq, E) bf16 (pre-scaled)
    k = k_ref[...][0, 0]                       # (L, E)  bf16
    s = lax.dot_general(q, k, (((1,), (1,)), ((), ())),
                        preferred_element_type=jnp.float32)   # (tq, L)
    s = s - jnp.max(s, axis=-1, keepdims=True)
    p = jnp.exp(s)
    p = p / jnp.sum(p, axis=-1, keepdims=True)
    a_ref[...] = p.astype(a_ref.dtype)[None, None]


def attention_map(q, k):
    """Full softmax(q k^T) map, bf16.  Only used when the caller asks for it."""
    B, H, L, E = q.shape
    tq = _pick_tile(L, 256, 8)
    return pl.pallas_call(
        _attn_map_kernel,
        out_shape=jax.ShapeDtypeStruct((B, H, L, L), jnp.bfloat16),
        grid=(B, H, L // tq),
        in_specs=[
            pl.BlockSpec((1, 1, tq, E), lambda b, h, qi: (b, h, qi, 0)),
            pl.BlockSpec((1, 1, L, E), lambda b, h, qi: (b, h, 0, 0)),
        ],
        out_specs=pl.BlockSpec((1, 1, tq, L), lambda b, h, qi: (b, h, qi, 0)),
        compiler_params=pltpu.CompilerParams(
            dimension_semantics=("parallel", "parallel", "parallel"),
            vmem_limit_bytes=_VMEM_LIMIT),
    )(q, k)


# ----------------------------------------------------------------------------
# 3) Fused: output projection + residual add + LayerNorm (norm1)
# ----------------------------------------------------------------------------
def _proj_add_ln_kernel(a_ref, w_ref, b_ref, r_ref, g_ref, be_ref, o_ref, *, eps):
    y = jnp.dot(a_ref[...], w_ref[...],
                preferred_element_type=jnp.float32) + b_ref[...]
    h = r_ref[...].astype(jnp.float32) + y
    mu = jnp.mean(h, axis=-1, keepdims=True)
    var = jnp.mean((h - mu) ** 2, axis=-1, keepdims=True)
    o_ref[...] = ((h - mu) * lax.rsqrt(var + eps) * g_ref[...]
                  + be_ref[...]).astype(o_ref.dtype)


def proj_add_layernorm(a2d, w, b, res2d, gamma, beta, eps=_EPS):
    """LayerNorm(res2d + a2d @ w + b).  a2d, res2d: (M, D) bf16; w: (D, D) bf16."""
    M, D = a2d.shape
    tm = _pick_tile(M, 512, 8)
    return pl.pallas_call(
        functools.partial(_proj_add_ln_kernel, eps=eps),
        out_shape=jax.ShapeDtypeStruct((M, D), jnp.bfloat16),
        grid=(M // tm,),
        in_specs=[
            pl.BlockSpec((tm, D), lambda i: (i, 0)),
            pl.BlockSpec((D, D), lambda i: (0, 0)),
            pl.BlockSpec((1, D), lambda i: (0, 0)),
            pl.BlockSpec((tm, D), lambda i: (i, 0)),
            pl.BlockSpec((1, D), lambda i: (0, 0)),
            pl.BlockSpec((1, D), lambda i: (0, 0)),
        ],
        out_specs=pl.BlockSpec((tm, D), lambda i: (i, 0)),
        compiler_params=pltpu.CompilerParams(
            dimension_semantics=("parallel",), vmem_limit_bytes=_VMEM_LIMIT),
    )(a2d, w, b.reshape(1, D), res2d, gamma.reshape(1, D), beta.reshape(1, D))


# ----------------------------------------------------------------------------
# 4) Fused FFN (1x1 convs): conv1 + ReLU + conv2 + residual + LayerNorm, with
#    the d_ff axis tiled (f32 accumulator) so the (tm, d_ff) intermediate and
#    full weights are never VMEM-resident at once.  Optionally also fuses the
#    final encoder LayerNorm (last layer).
# ----------------------------------------------------------------------------
def _ffn_add_ln_kernel(x_ref, w1_ref, b1_ref, w2_ref, b2_ref, g_ref, be_ref,
                       *rest, eps, fuse_final):
    if fuse_final:
        g2_ref, be2_ref, o_ref, acc_ref = rest
    else:
        o_ref, acc_ref = rest
    f = pl.program_id(1)

    @pl.when(f == 0)
    def _():
        acc_ref[...] = jnp.zeros_like(acc_ref)

    h = jnp.dot(x_ref[...], w1_ref[...],
                preferred_element_type=jnp.float32) + b1_ref[...]
    h = jnp.maximum(h, 0.0)
    acc_ref[...] += jnp.dot(h.astype(jnp.bfloat16), w2_ref[...],
                            preferred_element_type=jnp.float32)

    @pl.when(f == pl.num_programs(1) - 1)
    def _():
        r = x_ref[...].astype(jnp.float32) + acc_ref[...] + b2_ref[...]
        mu = jnp.mean(r, axis=-1, keepdims=True)
        var = jnp.mean((r - mu) ** 2, axis=-1, keepdims=True)
        y = (r - mu) * lax.rsqrt(var + eps) * g_ref[...] + be_ref[...]
        if fuse_final:
            mu2 = jnp.mean(y, axis=-1, keepdims=True)
            var2 = jnp.mean((y - mu2) ** 2, axis=-1, keepdims=True)
            y = (y - mu2) * lax.rsqrt(var2 + eps) * g2_ref[...] + be2_ref[...]
        o_ref[...] = y.astype(o_ref.dtype)


def ffn_add_layernorm(x2d, w1, b1, w2, b2, gamma, beta,
                      final_gamma=None, final_beta=None,
                      eps=_EPS, out_dtype=jnp.bfloat16):
    """LayerNorm(x2d + relu(x2d @ w1 + b1) @ w2 + b2), optionally followed by a
    second (final-encoder) LayerNorm — all in one kernel."""
    M, D = x2d.shape
    F = w1.shape[1]
    tm = _pick_tile(M, 512, 8)
    tf = _pick_tile(F, 1024, 128)
    fuse_final = final_gamma is not None
    in_specs = [
        pl.BlockSpec((tm, D), lambda i, f: (i, 0)),
        pl.BlockSpec((D, tf), lambda i, f: (0, f)),
        pl.BlockSpec((1, tf), lambda i, f: (0, f)),
        pl.BlockSpec((tf, D), lambda i, f: (f, 0)),
        pl.BlockSpec((1, D), lambda i, f: (0, 0)),
        pl.BlockSpec((1, D), lambda i, f: (0, 0)),
        pl.BlockSpec((1, D), lambda i, f: (0, 0)),
    ]
    args = [x2d, w1, b1.reshape(1, F), w2, b2.reshape(1, D),
            gamma.reshape(1, D), beta.reshape(1, D)]
    if fuse_final:
        in_specs += [pl.BlockSpec((1, D), lambda i, f: (0, 0)),
                     pl.BlockSpec((1, D), lambda i, f: (0, 0))]
        args += [final_gamma.reshape(1, D), final_beta.reshape(1, D)]
    return pl.pallas_call(
        functools.partial(_ffn_add_ln_kernel, eps=eps, fuse_final=fuse_final),
        out_shape=jax.ShapeDtypeStruct((M, D), out_dtype),
        grid=(M // tm, F // tf),
        in_specs=in_specs,
        out_specs=pl.BlockSpec((tm, D), lambda i, f: (i, 0)),
        scratch_shapes=[pltpu.VMEM((tm, D), jnp.float32)],
        compiler_params=pltpu.CompilerParams(
            dimension_semantics=("parallel", "arbitrary"),
            vmem_limit_bytes=_VMEM_LIMIT),
    )(*args)


# ----------------------------------------------------------------------------
# Module-level composition
# ----------------------------------------------------------------------------
def encoder_layer(x_bf, p, n_heads, output_attention=False,
                  final_norm=None, out_dtype=jnp.bfloat16):
    """x + attn -> norm1 -> FFN (1x1 convs) -> residual -> norm2 [-> final norm]."""
    B, L, D = x_bf.shape
    H = n_heads
    E = D // H
    x2 = x_bf.reshape(B * L, D)

    # Fused QKV projection (one MXU pass, 3x wider N), bf16 activations.
    qkv = matmul_bias(x2, p["w_qkv"], p["b_qkv"])                 # (M, 3D) bf16
    qkv = qkv.reshape(B, L, 3, H, E).transpose(2, 0, 3, 1, 4)     # (3, B, H, L, E)
    q, k, v = qkv[0], qkv[1], qkv[2]

    # Flash-style attention (1/sqrt(E) already folded into W_q).
    ctx = flash_attention(q, k, v)                                # (B, H, L, E) bf16
    attn = attention_map(q, k) if output_attention else None      # (B, H, L, L) bf16

    ctx2 = ctx.transpose(0, 2, 1, 3).reshape(B * L, D)
    # Fused: o-projection + residual + LayerNorm (norm1)
    x1 = proj_add_layernorm(ctx2, p["wo"], p["bo"], x2, p["ln1_g"], p["ln1_b"])
    # Fused: FFN + residual + LayerNorm (norm2) [+ final encoder norm if last layer]
    fg, fb = (final_norm if final_norm is not None else (None, None))
    out = ffn_add_layernorm(x1, p["w1"], p["b1"], p["w2"], p["b2"],
                            p["ln2_g"], p["ln2_b"],
                            final_gamma=fg, final_beta=fb, out_dtype=out_dtype)
    return out.reshape(B, L, D), attn


def encoder_forward(x, params, n_heads, output_attention=False):
    """Encoder.forward with conv_layers=None: returns (x, attns, g=None)."""
    layers = params["layers"]
    assert len(layers) >= 1
    x = x.astype(jnp.bfloat16)
    attns = []
    for idx, layer_p in enumerate(layers):
        is_last = idx == len(layers) - 1
        x, attn = encoder_layer(
            x, layer_p, n_heads, output_attention,
            final_norm=(params["norm_g"], params["norm_b"]) if is_last else None,
            out_dtype=jnp.float32 if is_last else jnp.bfloat16)
        attns.append(attn)
    g = None
    # TODO(synk): MEConvLayer / distilling conv branch not exercised (conv_layers=None).
    return x, attns, g


# ----------------------------------------------------------------------------
# Deterministic parameter construction (matmul weights in bf16, rest f32).
# The 1/sqrt(head_dim) attention scale is folded into W_q / b_q here.
# ----------------------------------------------------------------------------
def init_params(key, n_layers, d_model, d_ff, n_heads):
    head_dim = d_model // n_heads
    scale = 1.0 / sqrt(head_dim)

    layers = []
    for _ in range(n_layers):
        key, k_qkv, k_o, k_1, k_2 = jax.random.split(key, 5)
        w_qkv = 0.1 * jax.random.normal(k_qkv, (d_model, 3 * d_model), jnp.float32)
        b_qkv = jnp.zeros((3 * d_model,), jnp.float32)
        # Fold softmax scale into the q projection (columns 0..d_model-1).
        w_qkv = w_qkv.at[:, :d_model].multiply(scale)
        b_qkv = b_qkv.at[:d_model].multiply(scale)
        layers.append({
            "w_qkv": w_qkv.astype(jnp.bfloat16),
            "b_qkv": b_qkv,
            "wo": (0.1 * jax.random.normal(k_o, (d_model, d_model), jnp.float32)
                   ).astype(jnp.bfloat16),
            "bo": jnp.zeros((d_model,), jnp.float32),
            "w1": (0.1 * jax.random.normal(k_1, (d_model, d_ff), jnp.float32)
                   ).astype(jnp.bfloat16),
            "b1": jnp.zeros((d_ff,), jnp.float32),
            "w2": (0.1 * jax.random.normal(k_2, (d_ff, d_model), jnp.float32)
                   ).astype(jnp.bfloat16),
            "b2": jnp.zeros((d_model,), jnp.float32),
            "ln1_g": jnp.ones((d_model,), jnp.float32),
            "ln1_b": jnp.zeros((d_model,), jnp.float32),
            "ln2_g": jnp.ones((d_model,), jnp.float32),
            "ln2_b": jnp.zeros((d_model,), jnp.float32),
        })
    return {
        "layers": layers,
        "norm_g": jnp.ones((d_model,), jnp.float32),
        "norm_b": jnp.zeros((d_model,), jnp.float32),
    }


# ----------------------------------------------------------------------------
if __name__ == "__main__":
    B, L, D = 2, 8, 32          # batch, seq len, d_model
    n_heads, d_ff, n_layers = 4, 64, 2

    key = jax.random.PRNGKey(0)
    kx, kp = jax.random.split(key)
    x = jax.random.normal(kx, (B, L, D), dtype=jnp.float32)
    params = init_params(kp, n_layers, D, d_ff, n_heads)

    fwd = jax.jit(lambda xx, pp: encoder_forward(xx, pp, n_heads,
                                                 output_attention=True))
    out, attns, g = fwd(x, params)
    jax.block_until_ready(out)
    for a in attns:
        if a is not None:
            jax.block_until_ready(a)

    assert out.shape == (B, L, D)
    assert out.dtype == jnp.float32
    assert len(attns) == n_layers and attns[0].shape == (B, n_heads, L, L)
    assert g is None
    print("KERNEL_OK")
</pallas_src>

<mosaic_0001>
module attributes {stable_mosaic.version = 11 : i64} {
  func.func @_matmul_bias_kernel(%arg0: i32, %arg1: i32, %arg2: i32, %arg3: memref<16x32xbf16, #tpu.memory_space<vmem>>, %arg4: memref<32x96xbf16, #tpu.memory_space<vmem>>, %arg5: memref<1x96xf32, #tpu.memory_space<vmem>>, %arg6: memref<16x96xbf16, #tpu.memory_space<vmem>>, %arg7: memref<16x96xf32, #tpu.memory_space<vmem>>) attributes {dimension_semantics = [#tpu.dimension_semantics<parallel>, #tpu.dimension_semantics<parallel>, #tpu.dimension_semantics<arbitrary>], iteration_bounds = array<i64: 1, 1, 1>, scalar_prefetch = 0 : i64, scratch_operands = 1 : i64, tpu.core_type = #tpu.core_type<tc>, window_params = [{transform_indices = @transform_0, window_bounds = array<i64: 16, 32>}, {transform_indices = @transform_1, window_bounds = array<i64: 32, 96>}, {transform_indices = @transform_2, window_bounds = array<i64: 1, 96>}, {transform_indices = @transform_3, window_bounds = array<i64: 16, 96>}]} {
    %c0_i32 = arith.constant 0 : i32
    %0 = arith.cmpi eq, %arg2, %c0_i32 : i32
    %1 = arith.extui %0 : i1 to i32
    %c0_i32_0 = arith.constant 0 : i32
    %2 = arith.cmpi ne, %1, %c0_i32_0 : i32
    scf.if %2 {
      %cst_10 = arith.constant 0.000000e+00 : f32
      %12 = vector.broadcast %cst_10 : f32 to vector<16x96xf32>
      %c0_11 = arith.constant 0 : index
      %c0_12 = arith.constant 0 : index
      %13 = vector.load %arg7[%c0_11, %c0_12] : memref<16x96xf32, #tpu.memory_space<vmem>>, vector<16x96xf32>
      tpu.vector_store %arg7[%c0_11, %c0_12], %12 {strides = array<i32>} : memref<16x96xf32, #tpu.memory_space<vmem>>, vector<16x96xf32>,
    } else {
    }
    %c0 = arith.constant 0 : index
    %c0_1 = arith.constant 0 : index
    %3 = vector.load %arg7[%c0, %c0_1] : memref<16x96xf32, #tpu.memory_space<vmem>>, vector<16x96xf32>
    %c0_2 = arith.constant 0 : index
    %c0_3 = arith.constant 0 : index
    %4 = vector.load %arg3[%c0_2, %c0_3] : memref<16x32xbf16, #tpu.memory_space<vmem>>, vector<16x32xbf16>
    %c0_4 = arith.constant 0 : index
    %c0_5 = arith.constant 0 : index
    %5 = vector.load %arg4[%c0_4, %c0_5] : memref<32x96xbf16, #tpu.memory_space<vmem>>, vector<32x96xbf16>
    %cst = arith.constant dense<0.000000e+00> : vector<16x96xf32>
    %6 = tpu.matmul %4, %5, %cst {dimension_numbers = #tpu.dot_dimension_numbers<[1], [0], [0], [1], [0, 0, 1, 1], [], []>} : vector<16x32xbf16>, vector<32x96xbf16>, vector<16x96xf32> -> vector<16x96xf32>
    %7 = arith.addf %3, %6 : vector<16x96xf32>
    %c0_6 = arith.constant 0 : index
    %c0_7 = arith.constant 0 : index
    %8 = vector.load %arg7[%c0_6, %c0_7] : memref<16x96xf32, #tpu.memory_space<vmem>>, vector<16x96xf32>
    tpu.vector_store %arg7[%c0_6, %c0_7], %7 {strides = array<i32>} : memref<16x96xf32, #tpu.memory_space<vmem>>, vector<16x96xf32>,
    %c0_i32_8 = arith.constant 0 : i32
    %9 = arith.cmpi eq, %arg2, %c0_i32_8 : i32
    %10 = arith.extui %9 : i1 to i32
    %c0_i32_9 = arith.constant 0 : i32
    %11 = arith.cmpi ne, %10, %c0_i32_9 : i32
    scf.if %11 {
      %c0_10 = arith.constant 0 : index
      %c0_11 = arith.constant 0 : index
      %12 = vector.load %arg7[%c0_10, %c0_11] : memref<16x96xf32, #tpu.memory_space<vmem>>, vector<16x96xf32>
      %c0_12 = arith.constant 0 : index
      %c0_13 = arith.constant 0 : index
      %13 = vector.load %arg5[%c0_12, %c0_13] : memref<1x96xf32, #tpu.memory_space<vmem>>, vector<1x96xf32>
      %14 = vector.broadcast %13 : vector<1x96xf32> to vector<16x96xf32>
      %15 = arith.addf %12, %14 : vector<16x96xf32>
      %16 = arith.truncf %15 : vector<16x96xf32> to vector<16x96xbf16>
      %c0_14 = arith.constant 0 : index
      %c0_15 = arith.constant 0 : index
      %17 = vector.load %arg6[%c0_14, %c0_15] : memref<16x96xbf16, #tpu.memory_space<vmem>>, vector<16x96xbf16>
      tpu.vector_store %arg6[%c0_14, %c0_15], %16 {strides = array<i32>} : memref<16x96xbf16, #tpu.memory_space<vmem>>, vector<16x96xbf16>,
    } else {
    }
    return
  }
  func.func @transform_0(%arg0: i32, %arg1: i32, %arg2: i32) -> (i32, i32) {
    %c0_i32 = arith.constant 0 : i32
    return %arg0, %arg2 : i32, i32
  }
  func.func @transform_1(%arg0: i32, %arg1: i32, %arg2: i32) -> (i32, i32) {
    %c0_i32 = arith.constant 0 : i32
    return %arg2, %arg1 : i32, i32
  }
  func.func @transform_2(%arg0: i32, %arg1: i32, %arg2: i32) -> (i32, i32) {
    %c0_i32 = arith.constant 0 : i32
    %c0_i32_0 = arith.constant 0 : i32
    return %c0_i32, %arg1 : i32, i32
  }
  func.func @transform_3(%arg0: i32, %arg1: i32, %arg2: i32) -> (i32, i32) {
    %c0_i32 = arith.constant 0 : i32
    return %arg0, %arg1 : i32, i32
  }
}

module attributes {stable_mosaic.version = 11 : i64} {
  func.func @_flash_attn_kernel(%arg0: i32, %arg1: i32, %arg2: i32, %arg3: i32, %arg4: memref<1x1x8x8xbf16, #tpu.memory_space<vmem>>, %arg5: memref<1x1x8x8xbf16, #tpu.memory_space<vmem>>, %arg6: memref<1x1x8x8xbf16, #tpu.memory_space<vmem>>, %arg7: memref<1x1x8x8xbf16, #tpu.memory_space<vmem>>, %arg8: memref<8x1xf32, #tpu.memory_space<vmem>>, %arg9: memref<8x1xf32, #tpu.memory_space<vmem>>, %arg10: memref<8x8xf32, #tpu.memory_space<vmem>>) attributes {dimension_semantics = [#tpu.dimension_semantics<parallel>, #tpu.dimension_semantics<parallel>, #tpu.dimension_semantics<parallel>, #tpu.dimension_semantics<arbitrary>], iteration_bounds = array<i64: 2, 4, 1, 1>, scalar_prefetch = 0 : i64, scratch_operands = 3 : i64, tpu.core_type = #tpu.core_type<tc>, window_params = [{transform_indices = @transform_0, window_bounds = array<i64: 1, 1, 8, 8>}, {transform_indices = @transform_1, window_bounds = array<i64: 1, 1, 8, 8>}, {transform_indices = @transform_2, window_bounds = array<i64: 1, 1, 8, 8>}, {transform_indices = @transform_3, window_bounds = array<i64: 1, 1, 8, 8>}]} {
    %c0_i32 = arith.constant 0 : i32
    %0 = arith.cmpi eq, %arg3, %c0_i32 : i32
    %1 = arith.extui %0 : i1 to i32
    %c0_i32_0 = arith.constant 0 : i32
    %2 = arith.cmpi ne, %1, %c0_i32_0 : i32
    scf.if %2 {
      %cst_31 = arith.constant 0xFF800000 : f32
      %37 = vector.broadcast %cst_31 : f32 to vector<8x1xf32>
      %c0_32 = arith.constant 0 : index
      %c0_33 = arith.constant 0 : index
      %38 = vector.load %arg8[%c0_32, %c0_33] : memref<8x1xf32, #tpu.memory_space<vmem>>, vector<8x1xf32>
      tpu.vector_store %arg8[%c0_32, %c0_33], %37 {strides = array<i32>} : memref<8x1xf32, #tpu.memory_space<vmem>>, vector<8x1xf32>,
      %cst_34 = arith.constant 0.000000e+00 : f32
      %39 = vector.broadcast %cst_34 : f32 to vector<8x1xf32>
      %c0_35 = arith.constant 0 : index
      %c0_36 = arith.constant 0 : index
      %40 = vector.load %arg9[%c0_35, %c0_36] : memref<8x1xf32, #tpu.memory_space<vmem>>, vector<8x1xf32>
      tpu.vector_store %arg9[%c0_35, %c0_36], %39 {strides = array<i32>} : memref<8x1xf32, #tpu.memory_space<vmem>>, vector<8x1xf32>,
      %cst_37 = arith.constant 0.000000e+00 : f32
      %41 = vector.broadcast %cst_37 : f32 to vector<8x8xf32>
      %c0_38 = arith.constant 0 : index
      %c0_39 = arith.constant 0 : index
      %42 = vector.load %arg10[%c0_38, %c0_39] : memref<8x8xf32, #tpu.memory_space<vmem>>, vector<8x8xf32>
      tpu.vector_store %arg10[%c0_38, %c0_39], %41 {strides = array<i32>} : memref<8x8xf32, #tpu.memory_space<vmem>>, vector<8x8xf32>,
    } else {
    }
    %c0 = arith.constant 0 : index
    %c0_1 = arith.constant 0 : index
    %c0_2 = arith.constant 0 : index
    %c0_3 = arith.constant 0 : index
    %3 = vector.load %arg4[%c0, %c0_1, %c0_2, %c0_3] : memref<1x1x8x8xbf16, #tpu.memory_space<vmem>>, vector<1x1x8x8xbf16>
    %4 = vector.shape_cast %3 : vector<1x1x8x8xbf16> to vector<8x8xbf16>
    %c0_4 = arith.constant 0 : index
    %c0_5 = arith.constant 0 : index
    %c0_6 = arith.constant 0 : index
    %c0_7 = arith.constant 0 : index
    %5 = vector.load %arg5[%c0_4, %c0_5, %c0_6, %c0_7] : memref<1x1x8x8xbf16, #tpu.memory_space<vmem>>, vector<1x1x8x8xbf16>
    %6 = vector.shape_cast %5 : vector<1x1x8x8xbf16> to vector<8x8xbf16>
    %c0_8 = arith.constant 0 : index
    %c0_9 = arith.constant 0 : index
    %c0_10 = arith.constant 0 : index
    %c0_11 = arith.constant 0 : index
    %7 = vector.load %arg6[%c0_8, %c0_9, %c0_10, %c0_11] : memref<1x1x8x8xbf16, #tpu.memory_space<vmem>>, vector<1x1x8x8xbf16>
    %8 = vector.shape_cast %7 : vector<1x1x8x8xbf16> to vector<8x8xbf16>
    %cst = arith.constant dense<0.000000e+00> : vector<8x8xf32>
    %9 = tpu.matmul %4, %6, %cst {dimension_numbers = #tpu.dot_dimension_numbers<[1], [1], [0], [0], [0, 0, 1, 0], [], []>} : vector<8x8xbf16>, vector<8x8xbf16>, vector<8x8xf32> -> vector<8x8xf32>
    %c0_12 = arith.constant 0 : index
    %c0_13 = arith.constant 0 : index
    %10 = vector.load %arg8[%c0_12, %c0_13] : memref<8x1xf32, #tpu.memory_space<vmem>>, vector<8x1xf32>
    %cst_14 = arith.constant dense<0xFF800000> : vector<8xf32>
    %11 = vector.multi_reduction <maximumf>, %9, %cst_14 [1] : vector<8x8xf32> to vector<8xf32>
    %12 = vector.shape_cast %11 : vector<8xf32> to vector<8x1xf32>
    %13 = arith.maximumf %10, %12 : vector<8x1xf32>
    %c0_15 = arith.constant 0 : index
    %c0_16 = arith.constant 0 : index
    %14 = vector.load %arg8[%c0_15, %c0_16] : memref<8x1xf32, #tpu.memory_space<vmem>>, vector<8x1xf32>
    %15 = arith.subf %14, %13 : vector<8x1xf32>
    %16 = math.exp %15 : vector<8x1xf32>
    %17 = vector.broadcast %13 : vector<8x1xf32> to vector<8x8xf32>
    %18 = arith.subf %9, %17 : vector<8x8xf32>
    %19 = math.exp %18 : vector<8x8xf32>
    %c0_17 = arith.constant 0 : index
    %c0_18 = arith.constant 0 : index
    %20 = vector.load %arg9[%c0_17, %c0_18] : memref<8x1xf32, #tpu.memory_space<vmem>>, vector<8x1xf32>
    %21 = arith.mulf %16, %20 : vector<8x1xf32>
    %cst_19 = arith.constant dense<0.000000e+00> : vector<8xf32>
    %22 = vector.multi_reduction <add>, %19, %cst_19 [1] : vector<8x8xf32> to vector<8xf32>
    %23 = vector.shape_cast %22 : vector<8xf32> to vector<8x1xf32>
    %24 = arith.addf %21, %23 : vector<8x1xf32>
    %c0_20 = arith.constant 0 : index
    %c0_21 = arith.constant 0 : index
    %25 = vector.load %arg9[%c0_20, %c0_21] : memref<8x1xf32, #tpu.memory_space<vmem>>, vector<8x1xf32>
    tpu.vector_store %arg9[%c0_20, %c0_21], %24 {strides = array<i32>} : memref<8x1xf32, #tpu.memory_space<vmem>>, vector<8x1xf32>,
    %c0_22 = arith.constant 0 : index
    %c0_23 = arith.constant 0 : index
    %26 = vector.load %arg10[%c0_22, %c0_23] : memref<8x8xf32, #tpu.memory_space<vmem>>, vector<8x8xf32>
    %27 = vector.broadcast %16 : vector<8x1xf32> to vector<8x8xf32>
    %28 = arith.mulf %27, %26 : vector<8x8xf32>
    %29 = arith.truncf %19 : vector<8x8xf32> to vector<8x8xbf16>
    %cst_24 = arith.constant dense<0.000000e+00> : vector<8x8xf32>
    %30 = tpu.matmul %29, %8, %cst_24 {dimension_numbers = #tpu.dot_dimension_numbers<[1], [0], [0], [1], [0, 0, 1, 1], [], []>} : vector<8x8xbf16>, vector<8x8xbf16>, vector<8x8xf32> -> vector<8x8xf32>
    %31 = arith.addf %28, %30 : vector<8x8xf32>
    %c0_25 = arith.constant 0 : index
    %c0_26 = arith.constant 0 : index
    %32 = vector.load %arg10[%c0_25, %c0_26] : memref<8x8xf32, #tpu.memory_space<vmem>>, vector<8x8xf32>
    tpu.vector_store %arg10[%c0_25, %c0_26], %31 {strides = array<i32>} : memref<8x8xf32, #tpu.memory_space<vmem>>, vector<8x8xf32>,
    %c0_27 = arith.constant 0 : index
    %c0_28 = arith.constant 0 : index
    %33 = vector.load %arg8[%c0_27, %c0_28] : memref<8x1xf32, #tpu.memory_space<vmem>>, vector<8x1xf32>
    tpu.vector_store %arg8[%c0_27, %c0_28], %13 {strides = array<i32>} : memref<8x1xf32, #tpu.memory_space<vmem>>, vector<8x1xf32>,
    %c0_i32_29 = arith.constant 0 : i32
    %34 = arith.cmpi eq, %arg3, %c0_i32_29 : i32
    %35 = arith.extui %34 : i1 to i32
    %c0_i32_30 = arith.constant 0 : i32
    %36 = arith.cmpi ne, %35, %c0_i32_30 : i32
    scf.if %36 {
      %c0_31 = arith.constant 0 : index
      %c0_32 = arith.constant 0 : index
      %37 = vector.load %arg10[%c0_31, %c0_32] : memref<8x8xf32, #tpu.memory_space<vmem>>, vector<8x8xf32>
      %c0_33 = arith.constant 0 : index
      %c0_34 = arith.constant 0 : index
      %38 = vector.load %arg9[%c0_33, %c0_34] : memref<8x1xf32, #tpu.memory_space<vmem>>, vector<8x1xf32>
      %39 = vector.broadcast %38 : vector<8x1xf32> to vector<8x8xf32>
      %40 = arith.divf %37, %39 : vector<8x8xf32>
      %41 = arith.truncf %40 : vector<8x8xf32> to vector<8x8xbf16>
      %42 = vector.shape_cast %41 : vector<8x8xbf16> to vector<1x1x8x8xbf16>
      %c0_35 = arith.constant 0 : index
      %c0_36 = arith.constant 0 : index
      %c0_37 = arith.constant 0 : index
      %c0_38 = arith.constant 0 : index
      %43 = vector.load %arg7[%c0_35, %c0_36, %c0_37, %c0_38] : memref<1x1x8x8xbf16, #tpu.memory_space<vmem>>, vector<1x1x8x8xbf16>
      tpu.vector_store %arg7[%c0_35, %c0_36, %c0_37, %c0_38], %42 {strides = array<i32>} : memref<1x1x8x8xbf16, #tpu.memory_space<vmem>>, vector<1x1x8x8xbf16>,
    } else {
    }
    return
  }
  func.func @transform_0(%arg0: i32, %arg1: i32, %arg2: i32, %arg3: i32) -> (i32, i32, i32, i32) {
    %c0_i32 = arith.constant 0 : i32
    %c0_i32_0 = arith.constant 0 : i32
    return %arg0, %arg1, %arg2, %c0_i32 : i32, i32, i32, i32
  }
  func.func @transform_1(%arg0: i32, %arg1: i32, %arg2: i32, %arg3: i32) -> (i32, i32, i32, i32) {
    %c0_i32 = arith.constant 0 : i32
    %c0_i32_0 = arith.constant 0 : i32
    return %arg0, %arg1, %arg3, %c0_i32 : i32, i32, i32, i32
  }
  func.func @transform_2(%arg0: i32, %arg1: i32, %arg2: i32, %arg3: i32) -> (i32, i32, i32, i32) {
    %c0_i32 = arith.constant 0 : i32
    %c0_i32_0 = arith.constant 0 : i32
    return %arg0, %arg1, %arg3, %c0_i32 : i32, i32, i32, i32
  }
  func.func @transform_3(%arg0: i32, %arg1: i32, %arg2: i32, %arg3: i32) -> (i32, i32, i32, i32) {
    %c0_i32 = arith.constant 0 : i32
    %c0_i32_0 = arith.constant 0 : i32
    return %arg0, %arg1, %arg2, %c0_i32 : i32, i32, i32, i32
  }
}

module attributes {stable_mosaic.version = 11 : i64} {
  func.func @_attn_map_kernel(%arg0: i32, %arg1: i32, %arg2: i32, %arg3: memref<1x1x8x8xbf16, #tpu.memory_space<vmem>>, %arg4: memref<1x1x8x8xbf16, #tpu.memory_space<vmem>>, %arg5: memref<1x1x8x8xbf16, #tpu.memory_space<vmem>>) attributes {dimension_semantics = [#tpu.dimension_semantics<parallel>, #tpu.dimension_semantics<parallel>, #tpu.dimension_semantics<parallel>], iteration_bounds = array<i64: 2, 4, 1>, scalar_prefetch = 0 : i64, scratch_operands = 0 : i64, tpu.core_type = #tpu.core_type<tc>, window_params = [{transform_indices = @transform_0, window_bounds = array<i64: 1, 1, 8, 8>}, {transform_indices = @transform_1, window_bounds = array<i64: 1, 1, 8, 8>}, {transform_indices = @transform_2, window_bounds = array<i64: 1, 1, 8, 8>}]} {
    %c0 = arith.constant 0 : index
    %c0_0 = arith.constant 0 : index
    %c0_1 = arith.constant 0 : index
    %c0_2 = arith.constant 0 : index
    %0 = vector.load %arg3[%c0, %c0_0, %c0_1, %c0_2] : memref<1x1x8x8xbf16, #tpu.memory_space<vmem>>, vector<1x1x8x8xbf16>
    %1 = vector.shape_cast %0 : vector<1x1x8x8xbf16> to vector<8x8xbf16>
    %c0_3 = arith.constant 0 : index
    %c0_4 = arith.constant 0 : index
    %c0_5 = arith.constant 0 : index
    %c0_6 = arith.constant 0 : index
    %2 = vector.load %arg4[%c0_3, %c0_4, %c0_5, %c0_6] : memref<1x1x8x8xbf16, #tpu.memory_space<vmem>>, vector<1x1x8x8xbf16>
    %3 = vector.shape_cast %2 : vector<1x1x8x8xbf16> to vector<8x8xbf16>
    %cst = arith.constant dense<0.000000e+00> : vector<8x8xf32>
    %4 = tpu.matmul %1, %3, %cst {dimension_numbers = #tpu.dot_dimension_numbers<[1], [1], [0], [0], [0, 0, 1, 0], [], []>} : vector<8x8xbf16>, vector<8x8xbf16>, vector<8x8xf32> -> vector<8x8xf32>
    %cst_7 = arith.constant dense<0xFF800000> : vector<8xf32>
    %5 = vector.multi_reduction <maximumf>, %4, %cst_7 [1] : vector<8x8xf32> to vector<8xf32>
    %6 = vector.shape_cast %5 : vector<8xf32> to vector<8x1xf32>
    %7 = vector.broadcast %6 : vector<8x1xf32> to vector<8x8xf32>
    %8 = arith.subf %4, %7 : vector<8x8xf32>
    %9 = math.exp %8 : vector<8x8xf32>
    %cst_8 = arith.constant dense<0.000000e+00> : vector<8xf32>
    %10 = vector.multi_reduction <add>, %9, %cst_8 [1] : vector<8x8xf32> to vector<8xf32>
    %11 = vector.shape_cast %10 : vector<8xf32> to vector<8x1xf32>
    %12 = vector.broadcast %11 : vector<8x1xf32> to vector<8x8xf32>
    %13 = arith.divf %9, %12 : vector<8x8xf32>
    %14 = arith.truncf %13 : vector<8x8xf32> to vector<8x8xbf16>
    %15 = vector.shape_cast %14 : vector<8x8xbf16> to vector<1x1x8x8xbf16>
    %c0_9 = arith.constant 0 : index
    %c0_10 = arith.constant 0 : index
    %c0_11 = arith.constant 0 : index
    %c0_12 = arith.constant 0 : index
    %16 = vector.load %arg5[%c0_9, %c0_10, %c0_11, %c0_12] : memref<1x1x8x8xbf16, #tpu.memory_space<vmem>>, vector<1x1x8x8xbf16>
    tpu.vector_store %arg5[%c0_9, %c0_10, %c0_11, %c0_12], %15 {strides = array<i32>} : memref<1x1x8x8xbf16, #tpu.memory_space<vmem>>, vector<1x1x8x8xbf16>,
    return
  }
  func.func @transform_0(%arg0: i32, %arg1: i32, %arg2: i32) -> (i32, i32, i32, i32) {
    %c0_i32 = arith.constant 0 : i32
    %c0_i32_0 = arith.constant 0 : i32
    return %arg0, %arg1, %arg2, %c0_i32 : i32, i32, i32, i32
  }
  func.func @transform_1(%arg0: i32, %arg1: i32, %arg2: i32) -> (i32, i32, i32, i32) {
    %c0_i32 = arith.constant 0 : i32
    %c0_i32_0 = arith.constant 0 : i32
    %c0_i32_1 = arith.constant 0 : i32
    return %arg0, %arg1, %c0_i32, %c0_i32_0 : i32, i32, i32, i32
  }
  func.func @transform_2(%arg0: i32, %arg1: i32, %arg2: i32) -> (i32, i32, i32, i32) {
    %c0_i32 = arith.constant 0 : i32
    %c0_i32_0 = arith.constant 0 : i32
    return %arg0, %arg1, %arg2, %c0_i32 : i32, i32, i32, i32
  }
}

module attributes {stable_mosaic.version = 11 : i64} {
  func.func @_proj_add_ln_kernel(%arg0: i32, %arg1: memref<16x32xbf16, #tpu.memory_space<vmem>>, %arg2: memref<32x32xbf16, #tpu.memory_space<vmem>>, %arg3: memref<1x32xf32, #tpu.memory_space<vmem>>, %arg4: memref<16x32xbf16, #tpu.memory_space<vmem>>, %arg5: memref<1x32xf32, #tpu.memory_space<vmem>>, %arg6: memref<1x32xf32, #tpu.memory_space<vmem>>, %arg7: memref<16x32xbf16, #tpu.memory_space<vmem>>) attributes {dimension_semantics = [#tpu.dimension_semantics<parallel>], iteration_bounds = array<i64: 1>, scalar_prefetch = 0 : i64, scratch_operands = 0 : i64, tpu.core_type = #tpu.core_type<tc>, window_params = [{transform_indices = @transform_0, window_bounds = array<i64: 16, 32>}, {pipeline_mode = #tpu.pipeline_mode<synchronous>, transform_indices = @transform_1, window_bounds = array<i64: 32, 32>}, {pipeline_mode = #tpu.pipeline_mode<synchronous>, transform_indices = @transform_2, window_bounds = array<i64: 1, 32>}, {transform_indices = @transform_3, window_bounds = array<i64: 16, 32>}, {pipeline_mode = #tpu.pipeline_mode<synchronous>, transform_indices = @transform_4, window_bounds = array<i64: 1, 32>}, {pipeline_mode = #tpu.pipeline_mode<synchronous>, transform_indices = @transform_5, window_bounds = array<i64: 1, 32>}, {transform_indices = @transform_6, window_bounds = array<i64: 16, 32>}]} {
    %c0 = arith.constant 0 : index
    %c0_0 = arith.constant 0 : index
    %0 = vector.load %arg1[%c0, %c0_0] : memref<16x32xbf16, #tpu.memory_space<vmem>>, vector<16x32xbf16>
    %c0_1 = arith.constant 0 : index
    %c0_2 = arith.constant 0 : index
    %1 = vector.load %arg2[%c0_1, %c0_2] : memref<32x32xbf16, #tpu.memory_space<vmem>>, vector<32x32xbf16>
    %cst = arith.constant dense<0.000000e+00> : vector<16x32xf32>
    %2 = tpu.matmul %0, %1, %cst {dimension_numbers = #tpu.dot_dimension_numbers<[1], [0], [0], [1], [0, 0, 1, 1], [], []>} : vector<16x32xbf16>, vector<32x32xbf16>, vector<16x32xf32> -> vector<16x32xf32>
    %c0_3 = arith.constant 0 : index
    %c0_4 = arith.constant 0 : index
    %3 = vector.load %arg3[%c0_3, %c0_4] : memref<1x32xf32, #tpu.memory_space<vmem>>, vector<1x32xf32>
    %4 = vector.broadcast %3 : vector<1x32xf32> to vector<16x32xf32>
    %5 = arith.addf %2, %4 : vector<16x32xf32>
    %c0_5 = arith.constant 0 : index
    %c0_6 = arith.constant 0 : index
    %6 = vector.load %arg4[%c0_5, %c0_6] : memref<16x32xbf16, #tpu.memory_space<vmem>>, vector<16x32xbf16>
    %7 = arith.extf %6 : vector<16x32xbf16> to vector<16x32xf32>
    %8 = arith.addf %7, %5 : vector<16x32xf32>
    %cst_7 = arith.constant dense<0.000000e+00> : vector<16xf32>
    %9 = vector.multi_reduction <add>, %8, %cst_7 [1] : vector<16x32xf32> to vector<16xf32>
    %10 = vector.shape_cast %9 : vector<16xf32> to vector<16x1xf32>
    %cst_8 = arith.constant 3.200000e+01 : f32
    %11 = vector.broadcast %cst_8 : f32 to vector<16x1xf32>
    %12 = arith.divf %10, %11 : vector<16x1xf32>
    %13 = vector.broadcast %12 : vector<16x1xf32> to vector<16x32xf32>
    %14 = arith.subf %8, %13 : vector<16x32xf32>
    %15 = arith.mulf %14, %14 : vector<16x32xf32>
    %cst_9 = arith.constant dense<0.000000e+00> : vector<16xf32>
    %16 = vector.multi_reduction <add>, %15, %cst_9 [1] : vector<16x32xf32> to vector<16xf32>
    %17 = vector.shape_cast %16 : vector<16xf32> to vector<16x1xf32>
    %cst_10 = arith.constant 3.200000e+01 : f32
    %18 = vector.broadcast %cst_10 : f32 to vector<16x1xf32>
    %19 = arith.divf %17, %18 : vector<16x1xf32>
    %20 = vector.broadcast %12 : vector<16x1xf32> to vector<16x32xf32>
    %21 = arith.subf %8, %20 : vector<16x32xf32>
    %cst_11 = arith.constant 9.99999974E-6 : f32
    %22 = vector.broadcast %cst_11 : f32 to vector<16x1xf32>
    %23 = arith.addf %19, %22 : vector<16x1xf32>
    %24 = math.rsqrt %23 : vector<16x1xf32>
    %25 = vector.broadcast %24 : vector<16x1xf32> to vector<16x32xf32>
    %26 = arith.mulf %21, %25 : vector<16x32xf32>
    %c0_12 = arith.constant 0 : index
    %c0_13 = arith.constant 0 : index
    %27 = vector.load %arg5[%c0_12, %c0_13] : memref<1x32xf32, #tpu.memory_space<vmem>>, vector<1x32xf32>
    %28 = vector.broadcast %27 : vector<1x32xf32> to vector<16x32xf32>
    %29 = arith.mulf %26, %28 : vector<16x32xf32>
    %c0_14 = arith.constant 0 : index
    %c0_15 = arith.constant 0 : index
    %30 = vector.load %arg6[%c0_14, %c0_15] : memref<1x32xf32, #tpu.memory_space<vmem>>, vector<1x32xf32>
    %31 = vector.broadcast %30 : vector<1x32xf32> to vector<16x32xf32>
    %32 = arith.addf %29, %31 : vector<16x32xf32>
    %33 = arith.truncf %32 : vector<16x32xf32> to vector<16x32xbf16>
    %c0_16 = arith.constant 0 : index
    %c0_17 = arith.constant 0 : index
    %34 = vector.load %arg7[%c0_16, %c0_17] : memref<16x32xbf16, #tpu.memory_space<vmem>>, vector<16x32xbf16>
    tpu.vector_store %arg7[%c0_16, %c0_17], %33 {strides = array<i32>} : memref<16x32xbf16, #tpu.memory_space<vmem>>, vector<16x32xbf16>,
    return
  }
  func.func @transform_0(%arg0: i32) -> (i32, i32) {
    %c0_i32 = arith.constant 0 : i32
    %c0_i32_0 = arith.constant 0 : i32
    return %arg0, %c0_i32 : i32, i32
  }
  func.func @transform_1(%arg0: i32) -> (i32, i32) {
    %c0_i32 = arith.constant 0 : i32
    %c0_i32_0 = arith.constant 0 : i32
    %c0_i32_1 = arith.constant 0 : i32
    return %c0_i32, %c0_i32_0 : i32, i32
  }
  func.func @transform_2(%arg0: i32) -> (i32, i32) {
    %c0_i32 = arith.constant 0 : i32
    %c0_i32_0 = arith.constant 0 : i32
    %c0_i32_1 = arith.constant 0 : i32
    return %c0_i32, %c0_i32_0 : i32, i32
  }
  func.func @transform_3(%arg0: i32) -> (i32, i32) {
    %c0_i32 = arith.constant 0 : i32
    %c0_i32_0 = arith.constant 0 : i32
    return %arg0, %c0_i32 : i32, i32
  }
  func.func @transform_4(%arg0: i32) -> (i32, i32) {
    %c0_i32 = arith.constant 0 : i32
    %c0_i32_0 = arith.constant 0 : i32
    %c0_i32_1 = arith.constant 0 : i32
    return %c0_i32, %c0_i32_0 : i32, i32
  }
  func.func @transform_5(%arg0: i32) -> (i32, i32) {
    %c0_i32 = arith.constant 0 : i32
    %c0_i32_0 = arith.constant 0 : i32
    %c0_i32_1 = arith.constant 0 : i32
    return %c0_i32, %c0_i32_0 : i32, i32
  }
  func.func @transform_6(%arg0: i32) -> (i32, i32) {
    %c0_i32 = arith.constant 0 : i32
    %c0_i32_0 = arith.constant 0 : i32
    return %arg0, %c0_i32 : i32, i32
  }
}

module attributes {stable_mosaic.version = 11 : i64} {
  func.func @_ffn_add_ln_kernel(%arg0: i32, %arg1: i32, %arg2: memref<16x32xbf16, #tpu.memory_space<vmem>>, %arg3: memref<32x64xbf16, #tpu.memory_space<vmem>>, %arg4: memref<1x64xf32, #tpu.memory_space<vmem>>, %arg5: memref<64x32xbf16, #tpu.memory_space<vmem>>, %arg6: memref<1x32xf32, #tpu.memory_space<vmem>>, %arg7: memref<1x32xf32, #tpu.memory_space<vmem>>, %arg8: memref<1x32xf32, #tpu.memory_space<vmem>>, %arg9: memref<16x32xbf16, #tpu.memory_space<vmem>>, %arg10: memref<16x32xf32, #tpu.memory_space<vmem>>) attributes {dimension_semantics = [#tpu.dimension_semantics<parallel>, #tpu.dimension_semantics<arbitrary>], iteration_bounds = array<i64: 1, 1>, scalar_prefetch = 0 : i64, scratch_operands = 1 : i64, tpu.core_type = #tpu.core_type<tc>, window_params = [{transform_indices = @transform_0, window_bounds = array<i64: 16, 32>}, {transform_indices = @transform_1, window_bounds = array<i64: 32, 64>}, {transform_indices = @transform_2, window_bounds = array<i64: 1, 64>}, {transform_indices = @transform_3, window_bounds = array<i64: 64, 32>}, {pipeline_mode = #tpu.pipeline_mode<synchronous>, transform_indices = @transform_4, window_bounds = array<i64: 1, 32>}, {pipeline_mode = #tpu.pipeline_mode<synchronous>, transform_indices = @transform_5, window_bounds = array<i64: 1, 32>}, {pipeline_mode = #tpu.pipeline_mode<synchronous>, transform_indices = @transform_6, window_bounds = array<i64: 1, 32>}, {transform_indices = @transform_7, window_bounds = array<i64: 16, 32>}]} {
    %c0_i32 = arith.constant 0 : i32
    %0 = arith.cmpi eq, %arg1, %c0_i32 : i32
    %1 = arith.extui %0 : i1 to i32
    %c0_i32_0 = arith.constant 0 : i32
    %2 = arith.cmpi ne, %1, %c0_i32_0 : i32
    scf.if %2 {
      %cst_16 = arith.constant 0.000000e+00 : f32
      %20 = vector.broadcast %cst_16 : f32 to vector<16x32xf32>
      %c0_17 = arith.constant 0 : index
      %c0_18 = arith.constant 0 : index
      %21 = vector.load %arg10[%c0_17, %c0_18] : memref<16x32xf32, #tpu.memory_space<vmem>>, vector<16x32xf32>
      tpu.vector_store %arg10[%c0_17, %c0_18], %20 {strides = array<i32>} : memref<16x32xf32, #tpu.memory_space<vmem>>, vector<16x32xf32>,
    } else {
    }
    %c0 = arith.constant 0 : index
    %c0_1 = arith.constant 0 : index
    %3 = vector.load %arg2[%c0, %c0_1] : memref<16x32xbf16, #tpu.memory_space<vmem>>, vector<16x32xbf16>
    %c0_2 = arith.constant 0 : index
    %c0_3 = arith.constant 0 : index
    %4 = vector.load %arg3[%c0_2, %c0_3] : memref<32x64xbf16, #tpu.memory_space<vmem>>, vector<32x64xbf16>
    %cst = arith.constant dense<0.000000e+00> : vector<16x64xf32>
    %5 = tpu.matmul %3, %4, %cst {dimension_numbers = #tpu.dot_dimension_numbers<[1], [0], [0], [1], [0, 0, 1, 1], [], []>} : vector<16x32xbf16>, vector<32x64xbf16>, vector<16x64xf32> -> vector<16x64xf32>
    %c0_4 = arith.constant 0 : index
    %c0_5 = arith.constant 0 : index
    %6 = vector.load %arg4[%c0_4, %c0_5] : memref<1x64xf32, #tpu.memory_space<vmem>>, vector<1x64xf32>
    %7 = vector.broadcast %6 : vector<1x64xf32> to vector<16x64xf32>
    %8 = arith.addf %5, %7 : vector<16x64xf32>
    %cst_6 = arith.constant 0.000000e+00 : f32
    %9 = vector.broadcast %cst_6 : f32 to vector<16x64xf32>
    %10 = arith.maximumf %8, %9 : vector<16x64xf32>
    %c0_7 = arith.constant 0 : index
    %c0_8 = arith.constant 0 : index
    %11 = vector.load %arg10[%c0_7, %c0_8] : memref<16x32xf32, #tpu.memory_space<vmem>>, vector<16x32xf32>
    %12 = arith.truncf %10 : vector<16x64xf32> to vector<16x64xbf16>
    %c0_9 = arith.constant 0 : index
    %c0_10 = arith.constant 0 : index
    %13 = vector.load %arg5[%c0_9, %c0_10] : memref<64x32xbf16, #tpu.memory_space<vmem>>, vector<64x32xbf16>
    %cst_11 = arith.constant dense<0.000000e+00> : vector<16x32xf32>
    %14 = tpu.matmul %12, %13, %cst_11 {dimension_numbers = #tpu.dot_dimension_numbers<[1], [0], [0], [1], [0, 0, 1, 1], [], []>} : vector<16x64xbf16>, vector<64x32xbf16>, vector<16x32xf32> -> vector<16x32xf32>
    %15 = arith.addf %11, %14 : vector<16x32xf32>
    %c0_12 = arith.constant 0 : index
    %c0_13 = arith.constant 0 : index
    %16 = vector.load %arg10[%c0_12, %c0_13] : memref<16x32xf32, #tpu.memory_space<vmem>>, vector<16x32xf32>
    tpu.vector_store %arg10[%c0_12, %c0_13], %15 {strides = array<i32>} : memref<16x32xf32, #tpu.memory_space<vmem>>, vector<16x32xf32>,
    %c0_i32_14 = arith.constant 0 : i32
    %17 = arith.cmpi eq, %arg1, %c0_i32_14 : i32
    %18 = arith.extui %17 : i1 to i32
    %c0_i32_15 = arith.constant 0 : i32
    %19 = arith.cmpi ne, %18, %c0_i32_15 : i32
    scf.if %19 {
      %c0_16 = arith.constant 0 : index
      %c0_17 = arith.constant 0 : index
      %20 = vector.load %arg2[%c0_16, %c0_17] : memref<16x32xbf16, #tpu.memory_space<vmem>>, vector<16x32xbf16>
      %21 = arith.extf %20 : vector<16x32xbf16> to vector<16x32xf32>
      %c0_18 = arith.constant 0 : index
      %c0_19 = arith.constant 0 : index
      %22 = vector.load %arg10[%c0_18, %c0_19] : memref<16x32xf32, #tpu.memory_space<vmem>>, vector<16x32xf32>
      %23 = arith.addf %21, %22 : vector<16x32xf32>
      %c0_20 = arith.constant 0 : index
      %c0_21 = arith.constant 0 : index
      %24 = vector.load %arg6[%c0_20, %c0_21] : memref<1x32xf32, #tpu.memory_space<vmem>>, vector<1x32xf32>
      %25 = vector.broadcast %24 : vector<1x32xf32> to vector<16x32xf32>
      %26 = arith.addf %23, %25 : vector<16x32xf32>
      %cst_22 = arith.constant dense<0.000000e+00> : vector<16xf32>
      %27 = vector.multi_reduction <add>, %26, %cst_22 [1] : vector<16x32xf32> to vector<16xf32>
      %28 = vector.shape_cast %27 : vector<16xf32> to vector<16x1xf32>
      %cst_23 = arith.constant 3.200000e+01 : f32
      %29 = vector.broadcast %cst_23 : f32 to vector<16x1xf32>
      %30 = arith.divf %28, %29 : vector<16x1xf32>
      %31 = vector.broadcast %30 : vector<16x1xf32> to vector<16x32xf32>
      %32 = arith.subf %26, %31 : vector<16x32xf32>
      %33 = arith.mulf %32, %32 : vector<16x32xf32>
      %cst_24 = arith.constant dense<0.000000e+00> : vector<16xf32>
      %34 = vector.multi_reduction <add>, %33, %cst_24 [1] : vector<16x32xf32> to vector<16xf32>
      %35 = vector.shape_cast %34 : vector<16xf32> to vector<16x1xf32>
      %cst_25 = arith.constant 3.200000e+01 : f32
      %36 = vector.broadcast %cst_25 : f32 to vector<16x1xf32>
      %37 = arith.divf %35, %36 : vector<16x1xf32>
      %38 = vector.broadcast %30 : vector<16x1xf32> to vector<16x32xf32>
      %39 = arith.subf %26, %38 : vector<16x32xf32>
      %cst_26 = arith.constant 9.99999974E-6 : f32
      %40 = vector.broadcast %cst_26 : f32 to vector<16x1xf32>
      %41 = arith.addf %37, %40 : vector<16x1xf32>
      %42 = math.rsqrt %41 : vector<16x1xf32>
      %43 = vector.broadcast %42 : vector<16x1xf32> to vector<16x32xf32>
      %44 = arith.mulf %39, %43 : vector<16x32xf32>
      %c0_27 = arith.constant 0 : index
      %c0_28 = arith.constant 0 : index
      %45 = vector.load %arg7[%c0_27, %c0_28] : memref<1x32xf32, #tpu.memory_space<vmem>>, vector<1x32xf32>
      %46 = vector.broadcast %45 : vector<1x32xf32> to vector<16x32xf32>
      %47 = arith.mulf %44, %46 : vector<16x32xf32>
      %c0_29 = arith.constant 0 : index
      %c0_30 = arith.constant 0 : index
      %48 = vector.load %arg8[%c0_29, %c0_30] : memref<1x32xf32, #tpu.memory_space<vmem>>, vector<1x32xf32>
      %49 = vector.broadcast %48 : vector<1x32xf32> to vector<16x32xf32>
      %50 = arith.addf %47, %49 : vector<16x32xf32>
      %51 = arith.truncf %50 : vector<16x32xf32> to vector<16x32xbf16>
      %c0_31 = arith.constant 0 : index
      %c0_32 = arith.constant 0 : index
      %52 = vector.load %arg9[%c0_31, %c0_32] : memref<16x32xbf16, #tpu.memory_space<vmem>>, vector<16x32xbf16>
      tpu.vector_store %arg9[%c0_31, %c0_32], %51 {strides = array<i32>} : memref<16x32xbf16, #tpu.memory_space<vmem>>, vector<16x32xbf16>,
    } else {
    }
    return
  }
  func.func @transform_0(%arg0: i32, %arg1: i32) -> (i32, i32) {
    %c0_i32 = arith.constant 0 : i32
    %c0_i32_0 = arith.constant 0 : i32
    return %arg0, %c0_i32 : i32, i32
  }
  func.func @transform_1(%arg0: i32, %arg1: i32) -> (i32, i32) {
    %c0_i32 = arith.constant 0 : i32
    %c0_i32_0 = arith.constant 0 : i32
    return %c0_i32, %arg1 : i32, i32
  }
  func.func @transform_2(%arg0: i32, %arg1: i32) -> (i32, i32) {
    %c0_i32 = arith.constant 0 : i32
    %c0_i32_0 = arith.constant 0 : i32
    return %c0_i32, %arg1 : i32, i32
  }
  func.func @transform_3(%arg0: i32, %arg1: i32) -> (i32, i32) {
    %c0_i32 = arith.constant 0 : i32
    %c0_i32_0 = arith.constant 0 : i32
    return %arg1, %c0_i32 : i32, i32
  }
  func.func @transform_4(%arg0: i32, %arg1: i32) -> (i32, i32) {
    %c0_i32 = arith.constant 0 : i32
    %c0_i32_0 = arith.constant 0 : i32
    %c0_i32_1 = arith.constant 0 : i32
    return %c0_i32, %c0_i32_0 : i32, i32
  }
  func.func @transform_5(%arg0: i32, %arg1: i32) -> (i32, i32) {
    %c0_i32 = arith.constant 0 : i32
    %c0_i32_0 = arith.constant 0 : i32
    %c0_i32_1 = arith.constant 0 : i32
    return %c0_i32, %c0_i32_0 : i32, i32
  }
  func.func @transform_6(%arg0: i32, %arg1: i32) -> (i32, i32) {
    %c0_i32 = arith.constant 0 : i32
    %c0_i32_0 = arith.constant 0 : i32
    %c0_i32_1 = arith.constant 0 : i32
    return %c0_i32, %c0_i32_0 : i32, i32
  }
  func.func @transform_7(%arg0: i32, %arg1: i32) -> (i32, i32) {
    %c0_i32 = arith.constant 0 : i32
    %c0_i32_0 = arith.constant 0 : i32
    return %arg0, %c0_i32 : i32, i32
  }
}

module attributes {stable_mosaic.version = 11 : i64} {
  func.func @_ffn_add_ln_kernel(%arg0: i32, %arg1: i32, %arg2: memref<16x32xbf16, #tpu.memory_space<vmem>>, %arg3: memref<32x64xbf16, #tpu.memory_space<vmem>>, %arg4: memref<1x64xf32, #tpu.memory_space<vmem>>, %arg5: memref<64x32xbf16, #tpu.memory_space<vmem>>, %arg6: memref<1x32xf32, #tpu.memory_space<vmem>>, %arg7: memref<1x32xf32, #tpu.memory_space<vmem>>, %arg8: memref<1x32xf32, #tpu.memory_space<vmem>>, %arg9: memref<1x32xf32, #tpu.memory_space<vmem>>, %arg10: memref<1x32xf32, #tpu.memory_space<vmem>>, %arg11: memref<16x32xf32, #tpu.memory_space<vmem>>, %arg12: memref<16x32xf32, #tpu.memory_space<vmem>>) attributes {dimension_semantics = [#tpu.dimension_semantics<parallel>, #tpu.dimension_semantics<arbitrary>], iteration_bounds = array<i64: 1, 1>, scalar_prefetch = 0 : i64, scratch_operands = 1 : i64, tpu.core_type = #tpu.core_type<tc>, window_params = [{transform_indices = @transform_0, window_bounds = array<i64: 16, 32>}, {transform_indices = @transform_1, window_bounds = array<i64: 32, 64>}, {transform_indices = @transform_2, window_bounds = array<i64: 1, 64>}, {transform_indices = @transform_3, window_bounds = array<i64: 64, 32>}, {pipeline_mode = #tpu.pipeline_mode<synchronous>, transform_indices = @transform_4, window_bounds = array<i64: 1, 32>}, {pipeline_mode = #tpu.pipeline_mode<synchronous>, transform_indices = @transform_5, window_bounds = array<i64: 1, 32>}, {pipeline_mode = #tpu.pipeline_mode<synchronous>, transform_indices = @transform_6, window_bounds = array<i64: 1, 32>}, {pipeline_mode = #tpu.pipeline_mode<synchronous>, transform_indices = @transform_7, window_bounds = array<i64: 1, 32>}, {pipeline_mode = #tpu.pipeline_mode<synchronous>, transform_indices = @transform_8, window_bounds = array<i64: 1, 32>}, {transform_indices = @transform_9, window_bounds = array<i64: 16, 32>}]} {
    %c0_i32 = arith.constant 0 : i32
    %0 = arith.cmpi eq, %arg1, %c0_i32 : i32
    %1 = arith.extui %0 : i1 to i32
    %c0_i32_0 = arith.constant 0 : i32
    %2 = arith.cmpi ne, %1, %c0_i32_0 : i32
    scf.if %2 {
      %cst_16 = arith.constant 0.000000e+00 : f32
      %20 = vector.broadcast %cst_16 : f32 to vector<16x32xf32>
      %c0_17 = arith.constant 0 : index
      %c0_18 = arith.constant 0 : index
      %21 = vector.load %arg12[%c0_17, %c0_18] : memref<16x32xf32, #tpu.memory_space<vmem>>, vector<16x32xf32>
      tpu.vector_store %arg12[%c0_17, %c0_18], %20 {strides = array<i32>} : memref<16x32xf32, #tpu.memory_space<vmem>>, vector<16x32xf32>,
    } else {
    }
    %c0 = arith.constant 0 : index
    %c0_1 = arith.constant 0 : index
    %3 = vector.load %arg2[%c0, %c0_1] : memref<16x32xbf16, #tpu.memory_space<vmem>>, vector<16x32xbf16>
    %c0_2 = arith.constant 0 : index
    %c0_3 = arith.constant 0 : index
    %4 = vector.load %arg3[%c0_2, %c0_3] : memref<32x64xbf16, #tpu.memory_space<vmem>>, vector<32x64xbf16>
    %cst = arith.constant dense<0.000000e+00> : vector<16x64xf32>
    %5 = tpu.matmul %3, %4, %cst {dimension_numbers = #tpu.dot_dimension_numbers<[1], [0], [0], [1], [0, 0, 1, 1], [], []>} : vector<16x32xbf16>, vector<32x64xbf16>, vector<16x64xf32> -> vector<16x64xf32>
    %c0_4 = arith.constant 0 : index
    %c0_5 = arith.constant 0 : index
    %6 = vector.load %arg4[%c0_4, %c0_5] : memref<1x64xf32, #tpu.memory_space<vmem>>, vector<1x64xf32>
    %7 = vector.broadcast %6 : vector<1x64xf32> to vector<16x64xf32>
    %8 = arith.addf %5, %7 : vector<16x64xf32>
    %cst_6 = arith.constant 0.000000e+00 : f32
    %9 = vector.broadcast %cst_6 : f32 to vector<16x64xf32>
    %10 = arith.maximumf %8, %9 : vector<16x64xf32>
    %c0_7 = arith.constant 0 : index
    %c0_8 = arith.constant 0 : index
    %11 = vector.load %arg12[%c0_7, %c0_8] : memref<16x32xf32, #tpu.memory_space<vmem>>, vector<16x32xf32>
    %12 = arith.truncf %10 : vector<16x64xf32> to vector<16x64xbf16>
    %c0_9 = arith.constant 0 : index
    %c0_10 = arith.constant 0 : index
    %13 = vector.load %arg5[%c0_9, %c0_10] : memref<64x32xbf16, #tpu.memory_space<vmem>>, vector<64x32xbf16>
    %cst_11 = arith.constant dense<0.000000e+00> : vector<16x32xf32>
    %14 = tpu.matmul %12, %13, %cst_11 {dimension_numbers = #tpu.dot_dimension_numbers<[1], [0], [0], [1], [0, 0, 1, 1], [], []>} : vector<16x64xbf16>, vector<64x32xbf16>, vector<16x32xf32> -> vector<16x32xf32>
    %15 = arith.addf %11, %14 : vector<16x32xf32>
    %c0_12 = arith.constant 0 : index
    %c0_13 = arith.constant 0 : index
    %16 = vector.load %arg12[%c0_12, %c0_13] : memref<16x32xf32, #tpu.memory_space<vmem>>, vector<16x32xf32>
    tpu.vector_store %arg12[%c0_12, %c0_13], %15 {strides = array<i32>} : memref<16x32xf32, #tpu.memory_space<vmem>>, vector<16x32xf32>,
    %c0_i32_14 = arith.constant 0 : i32
    %17 = arith.cmpi eq, %arg1, %c0_i32_14 : i32
    %18 = arith.extui %17 : i1 to i32
    %c0_i32_15 = arith.constant 0 : i32
    %19 = arith.cmpi ne, %18, %c0_i32_15 : i32
    scf.if %19 {
      %c0_16 = arith.constant 0 : index
      %c0_17 = arith.constant 0 : index
      %20 = vector.load %arg2[%c0_16, %c0_17] : memref<16x32xbf16, #tpu.memory_space<vmem>>, vector<16x32xbf16>
      %21 = arith.extf %20 : vector<16x32xbf16> to vector<16x32xf32>
      %c0_18 = arith.constant 0 : index
      %c0_19 = arith.constant 0 : index
      %22 = vector.load %arg12[%c0_18, %c0_19] : memref<16x32xf32, #tpu.memory_space<vmem>>, vector<16x32xf32>
      %23 = arith.addf %21, %22 : vector<16x32xf32>
      %c0_20 = arith.constant 0 : index
      %c0_21 = arith.constant 0 : index
      %24 = vector.load %arg6[%c0_20, %c0_21] : memref<1x32xf32, #tpu.memory_space<vmem>>, vector<1x32xf32>
      %25 = vector.broadcast %24 : vector<1x32xf32> to vector<16x32xf32>
      %26 = arith.addf %23, %25 : vector<16x32xf32>
      %cst_22 = arith.constant dense<0.000000e+00> : vector<16xf32>
      %27 = vector.multi_reduction <add>, %26, %cst_22 [1] : vector<16x32xf32> to vector<16xf32>
      %28 = vector.shape_cast %27 : vector<16xf32> to vector<16x1xf32>
      %cst_23 = arith.constant 3.200000e+01 : f32
      %29 = vector.broadcast %cst_23 : f32 to vector<16x1xf32>
      %30 = arith.divf %28, %29 : vector<16x1xf32>
      %31 = vector.broadcast %30 : vector<16x1xf32> to vector<16x32xf32>
      %32 = arith.subf %26, %31 : vector<16x32xf32>
      %33 = arith.mulf %32, %32 : vector<16x32xf32>
      %cst_24 = arith.constant dense<0.000000e+00> : vector<16xf32>
      %34 = vector.multi_reduction <add>, %33, %cst_24 [1] : vector<16x32xf32> to vector<16xf32>
      %35 = vector.shape_cast %34 : vector<16xf32> to vector<16x1xf32>
      %cst_25 = arith.constant 3.200000e+01 : f32
      %36 = vector.broadcast %cst_25 : f32 to vector<16x1xf32>
      %37 = arith.divf %35, %36 : vector<16x1xf32>
      %38 = vector.broadcast %30 : vector<16x1xf32> to vector<16x32xf32>
      %39 = arith.subf %26, %38 : vector<16x32xf32>
      %cst_26 = arith.constant 9.99999974E-6 : f32
      %40 = vector.broadcast %cst_26 : f32 to vector<16x1xf32>
      %41 = arith.addf %37, %40 : vector<16x1xf32>
      %42 = math.rsqrt %41 : vector<16x1xf32>
      %43 = vector.broadcast %42 : vector<16x1xf32> to vector<16x32xf32>
      %44 = arith.mulf %39, %43 : vector<16x32xf32>
      %c0_27 = arith.constant 0 : index
      %c0_28 = arith.constant 0 : index
      %45 = vector.load %arg7[%c0_27, %c0_28] : memref<1x32xf32, #tpu.memory_space<vmem>>, vector<1x32xf32>
      %46 = vector.broadcast %45 : vector<1x32xf32> to vector<16x32xf32>
      %47 = arith.mulf %44, %46 : vector<16x32xf32>
      %c0_29 = arith.constant 0 : index
      %c0_30 = arith.constant 0 : index
      %48 = vector.load %arg8[%c0_29, %c0_30] : memref<1x32xf32, #tpu.memory_space<vmem>>, vector<1x32xf32>
      %49 = vector.broadcast %48 : vector<1x32xf32> to vector<16x32xf32>
      %50 = arith.addf %47, %49 : vector<16x32xf32>
      %cst_31 = arith.constant dense<0.000000e+00> : vector<16xf32>
      %51 = vector.multi_reduction <add>, %50, %cst_31 [1] : vector<16x32xf32> to vector<16xf32>
      %52 = vector.shape_cast %51 : vector<16xf32> to vector<16x1xf32>
      %cst_32 = arith.constant 3.200000e+01 : f32
      %53 = vector.broadcast %cst_32 : f32 to vector<16x1xf32>
      %54 = arith.divf %52, %53 : vector<16x1xf32>
      %55 = vector.broadcast %54 : vector<16x1xf32> to vector<16x32xf32>
      %56 = arith.subf %50, %55 : vector<16x32xf32>
      %57 = arith.mulf %56, %56 : vector<16x32xf32>
      %cst_33 = arith.constant dense<0.000000e+00> : vector<16xf32>
      %58 = vector.multi_reduction <add>, %57, %cst_33 [1] : vector<16x32xf32> to vector<16xf32>
      %59 = vector.shape_cast %58 : vector<16xf32> to vector<16x1xf32>
      %cst_34 = arith.constant 3.200000e+01 : f32
      %60 = vector.broadcast %cst_34 : f32 to vector<16x1xf32>
      %61 = arith.divf %59, %60 : vector<16x1xf32>
      %62 = vector.broadcast %54 : vector<16x1xf32> to vector<16x32xf32>
      %63 = arith.subf %50, %62 : vector<16x32xf32>
      %cst_35 = arith.constant 9.99999974E-6 : f32
      %64 = vector.broadcast %cst_35 : f32 to vector<16x1xf32>
      %65 = arith.addf %61, %64 : vector<16x1xf32>
      %66 = math.rsqrt %65 : vector<16x1xf32>
      %67 = vector.broadcast %66 : vector<16x1xf32> to vector<16x32xf32>
      %68 = arith.mulf %63, %67 : vector<16x32xf32>
      %c0_36 = arith.constant 0 : index
      %c0_37 = arith.constant 0 : index
      %69 = vector.load %arg9[%c0_36, %c0_37] : memref<1x32xf32, #tpu.memory_space<vmem>>, vector<1x32xf32>
      %70 = vector.broadcast %69 : vector<1x32xf32> to vector<16x32xf32>
      %71 = arith.mulf %68, %70 : vector<16x32xf32>
      %c0_38 = arith.constant 0 : index
      %c0_39 = arith.constant 0 : index
      %72 = vector.load %arg10[%c0_38, %c0_39] : memref<1x32xf32, #tpu.memory_space<vmem>>, vector<1x32xf32>
      %73 = vector.broadcast %72 : vector<1x32xf32> to vector<16x32xf32>
      %74 = arith.addf %71, %73 : vector<16x32xf32>
      %c0_40 = arith.constant 0 : index
      %c0_41 = arith.constant 0 : index
      %75 = vector.load %arg11[%c0_40, %c0_41] : memref<16x32xf32, #tpu.memory_space<vmem>>, vector<16x32xf32>
      tpu.vector_store %arg11[%c0_40, %c0_41], %74 {strides = array<i32>} : memref<16x32xf32, #tpu.memory_space<vmem>>, vector<16x32xf32>,
    } else {
    }
    return
  }
  func.func @transform_0(%arg0: i32, %arg1: i32) -> (i32, i32) {
    %c0_i32 = arith.constant 0 : i32
    %c0_i32_0 = arith.constant 0 : i32
    return %arg0, %c0_i32 : i32, i32
  }
  func.func @transform_1(%arg0: i32, %arg1: i32) -> (i32, i32) {
    %c0_i32 = arith.constant 0 : i32
    %c0_i32_0 = arith.constant 0 : i32
    return %c0_i32, %arg1 : i32, i32
  }
  func.func @transform_2(%arg0: i32, %arg1: i32) -> (i32, i32) {
    %c0_i32 = arith.constant 0 : i32
    %c0_i32_0 = arith.constant 0 : i32
    return %c0_i32, %arg1 : i32, i32
  }
  func.func @transform_3(%arg0: i32, %arg1: i32) -> (i32, i32) {
    %c0_i32 = arith.constant 0 : i32
    %c0_i32_0 = arith.constant 0 : i32
    return %arg1, %c0_i32 : i32, i32
  }
  func.func @transform_4(%arg0: i32, %arg1: i32) -> (i32, i32) {
    %c0_i32 = arith.constant 0 : i32
    %c0_i32_0 = arith.constant 0 : i32
    %c0_i32_1 = arith.constant 0 : i32
    return %c0_i32, %c0_i32_0 : i32, i32
  }
  func.func @transform_5(%arg0: i32, %arg1: i32) -> (i32, i32) {
    %c0_i32 = arith.constant 0 : i32
    %c0_i32_0 = arith.constant 0 : i32
    %c0_i32_1 = arith.constant 0 : i32
    return %c0_i32, %c0_i32_0 : i32, i32
  }
  func.func @transform_6(%arg0: i32, %arg1: i32) -> (i32, i32) {
    %c0_i32 = arith.constant 0 : i32
    %c0_i32_0 = arith.constant 0 : i32
    %c0_i32_1 = arith.constant 0 : i32
    return %c0_i32, %c0_i32_0 : i32, i32
  }
  func.func @transform_7(%arg0: i32, %arg1: i32) -> (i32, i32) {
    %c0_i32 = arith.constant 0 : i32
    %c0_i32_0 = arith.constant 0 : i32
    %c0_i32_1 = arith.constant 0 : i32
    return %c0_i32, %c0_i32_0 : i32, i32
  }
  func.func @transform_8(%arg0: i32, %arg1: i32) -> (i32, i32) {
    %c0_i32 = arith.constant 0 : i32
    %c0_i32_0 = arith.constant 0 : i32
    %c0_i32_1 = arith.constant 0 : i32
    return %c0_i32, %c0_i32_0 : i32, i32
  }
  func.func @transform_9(%arg0: i32, %arg1: i32) -> (i32, i32) {
    %c0_i32 = arith.constant 0 : i32
    %c0_i32_0 = arith.constant 0 : i32
    return %arg0, %c0_i32 : i32, i32
  }
}

</mosaic_0001>

<llo_original>
// kernel: _lambda_.10
$region0: #{_lambda_.10}
  #allocation0 [shape = 'u32[]', space=smem, size = 0x4, offset = 0x4, fixed_abs, tag = 'smem constant byte address 0x4 - core index']
  #allocation1 [shape = 'u32[72,128]{1,0:T(1,128)}', space=vmem, size = 0x9000, scoped, tag = 'internal scratch']
  #allocation2 [shape = 'f32[16,96]{1,0:T(8,128)}', space=vmem, size = 0x2000, scoped, tag = 'scratch operand']
  %s0 = inlined_call_operand.vmem [shape: bf16[16,32], index: 0, kind: input, shape index: {}]
  %s1 = inlined_call_operand.vmem [shape: bf16[32,96], index: 1, kind: input, shape index: {}]
  %s2 = inlined_call_operand.vmem [shape: f32[1,96], index: 2, kind: input, shape index: {}]
  %s3 = inlined_call_operand.vmem [shape: bf16[16,96], index: 3, kind: output, shape index: {}]
  %s4 = sld [smem:[#allocation0]]
  $region30: #{_lambda_.10} parent=0
    _
  %s6 = ssub.s32 1, %s4
  %s7 = scalar_select 0, %s6, %s4
  // Predicated region
  $region2: #{_lambda_.10} parent=0 // pred_check
    _
  $region3: #{_lambda_.10} parent=0 // pred_check_branch
    %9 = sbr.rel (0) target = $region5
  $region4: #{_lambda_.10} parent=0 // pred_region
    _
  $region5: #{_lambda_.10} parent=0 // pred_fallthru
    _
  // Predicated region
  $region6: #{_lambda_.10} parent=0 // pred_check
    _
  $region7: #{_lambda_.10} parent=0 // pred_check_branch
    %11 = sbr.rel (0) target = $region9
  $region8: #{_lambda_.10} parent=0 // pred_region
    _
  $region9: #{_lambda_.10} parent=0 // pred_fallthru
    _
  // Predicated region
  $region10: #{_lambda_.10} parent=0 // pred_check
    _
  $region11: #{_lambda_.10} parent=0 // pred_check_branch
    %13 = sbr.rel (0) target = $region13
  $region12: #{_lambda_.10} parent=0 // pred_region
    _
  $region13: #{_lambda_.10} parent=0 // pred_fallthru
    _
  %p15 = scmp.eq.s32.totalorder 0, 0
  // Predicated region
  $region14: #{_lambda_.10} parent=0 // pred_check
    %p16 = pneg %p15
  $region15: #{_lambda_.10} parent=0 // pred_check_branch
    %18 = sbr.rel (%p16) target = $region17
  $region16: #{_lambda_.10} parent=0 // pred_region
    %vm19 = vcmask 785408
    %20 = vst.msk [vmem:[#allocation2] sm:$0xff] %vm19, 0.0
    %21 = vst.msk [vmem:[#allocation2 + $0x8] sm:$0xff] %vm19, 0.0
  $region17: #{_lambda_.10} parent=0 // pred_fallthru
    _
  %v22 = vld [vmem:[#allocation2] sm:$0xff]
  %v23 = vld [vmem:[#allocation2 + $0x8] sm:$0xff]
  %v24 = vld [vmem:[%s0] sm:$0xf]
  %v25 = vld [vmem:[%s0 + $0x4] sm:$0xf]
  %v26 = vld [vmem:[%s1] sm:$0xf]
  %v27 = vld [vmem:[%s1 + $0x4] sm:$0xf]
  %v28 = vld [vmem:[%s1 + $0x8] sm:$0xf]
  %v29 = vld [vmem:[%s1 + $0xc] sm:$0xf]
  %v32 = vunpack.c.l.b16 %v24
  %v33 = vunpack.c.l.b16 %v25
  %v34 = vpack.c.b16 %v33, %v32
  %v39 = vunpack.c.l.b16 %v26
  %v40 = vunpack.c.l.b16 %v27
  %v41 = vunpack.c.l.b16 %v28
  %v42 = vunpack.c.l.b16 %v29
  %v43 = vpack.c.b16 %v40, %v39
  %v44 = vpack.c.b16 %v42, %v41
  %vm47 = vcmask 261120
  %v49 = vsel %vm47, %v34, 0
  %51 = vmatpush.bf16.msra.mxu0 0
  %52 = vmatpush.bf16.msra.mxu0 0
  %53 = vmatpush.bf16.msra.mxu0 0
  %54 = vmatpush.bf16.msra.mxu0 0
  %55 = vmatpush.bf16.msra.mxu0 0
  %56 = vmatpush.bf16.msra.mxu0 0
  %57 = vmatpush.bf16.msra.mxu0 %v44
  %58 = vmatpush.bf16.msra.mxu0 %v43
  %59 = vmatmul.bf16.gmra.mxu0 %v49
  %v60 = vpop.f32.mrf.mxu0
  %v61 = vadd.f32 0.0, %v60
  %v62 = vpop.f32.mrf.mxu0
  %v63 = vadd.f32 0.0, %v62
  %64 = vdwg.mxu0
  %v65 = vadd.f32 %v22, %v61
  %v66 = vadd.f32 %v23, %v63
  %vm67 = vcmask 785408
  %68 = vst.msk [vmem:[#allocation2] sm:$0xff] %vm67, %v65
  %69 = vst.msk [vmem:[#allocation2 + $0x8] sm:$0xff] %vm67, %v66
  // Predicated region
  $region18: #{_lambda_.10} parent=0 // pred_check
    %p70 = pneg %p15
  $region19: #{_lambda_.10} parent=0 // pred_check_branch
    %72 = sbr.rel (%p70) target = $region21
  $region20: #{_lambda_.10} parent=0 // pred_region
    %v73 = vld [vmem:[#allocation2] sm:$0xff]
    %v74 = vld [vmem:[#allocation2 + $0x8] sm:$0xff]
    %v75 = vld [vmem:[%s2] sm:$0x1]
    %v77 = vperm.slane %v75, 0
    %v79 = vadd.f32 %v73, %v77
    %v80 = vadd.f32 %v74, %v77
    %v81 = vpack.c.bf16 %v79, %v79
    %v82 = vpack.c.bf16 %v80, %v80
    %vm83 = vcmask 781312
    %84 = vst.msk [vmem:[%s3] sm:$0xf] %vm83, %v81
    %85 = vst.msk [vmem:[%s3 + $0x4] sm:$0xf] %vm83, %v82
  $region21: #{_lambda_.10} parent=0 // pred_fallthru
    _
  // Predicated region
  $region22: #{_lambda_.10} parent=0 // pred_check
    _
  $region23: #{_lambda_.10} parent=0 // pred_check_branch
    %87 = sbr.rel (0) target = $region25
  $region24: #{_lambda_.10} parent=0 // pred_region
    _
  $region25: #{_lambda_.10} parent=0 // pred_fallthru
    _
  // Predicated region
  $region26: #{_lambda_.10} parent=0 // pred_check
    _
  $region27: #{_lambda_.10} parent=0 // pred_check_branch
    %89 = sbr.rel (0) target = $region29
  $region28: #{_lambda_.10} parent=0 // pred_region
    _
  $region29: #{_lambda_.10} parent=0 // pred_fallthru
    _

// kernel: _lambda_.12
$region0: #{_lambda_.12}
  #allocation0 [shape = 'u32[]', space=smem, size = 0x4, offset = 0x4, fixed_abs, tag = 'smem constant byte address 0x4 - core index']
  #allocation1 [shape = 'u32[72,128]{1,0:T(1,128)}', space=vmem, size = 0x9000, scoped, tag = 'internal scratch']
  %s0 = inlined_call_operand.vmem [shape: bf16[2,4,8,8], index: 0, kind: input, shape index: {}]
  %s1 = inlined_call_operand.vmem [shape: bf16[2,4,8,8], index: 1, kind: input, shape index: {}]
  %s2 = inlined_call_operand.hbm [shape: bf16[2,4,8,8], index: 2, kind: output, shape index: {}]
  %s3 = sld [smem:[#allocation0]]
  $region41: #{_lambda_.12} parent=0
    _
  %s5 = ssub.s32 1, %s3
  %s6 = scalar_select 0, %s5, %s3
  $region1: #{_lambda_.12} parent=0
    #allocation2 [shape = 'u8[4096]{0}', space=vmem, size = 0x1000, scoped, tag = 'output window, operand 0']
    #allocation3 [shape = 's32[2]{0}', space=sflag, size = 0x8, scoped, tag = 'scoped memory for _lambda_.12']
    %7 = vsyncpa [#allocation3], 0
    %s8 = scalar_lea.sflag [#allocation3], 1
    %9 = vsyncpa %s8, 0
    loop: start=0, step=1, limit=10
    $region2: #{_lambda_.12} parent=1 // loop_pre_header
      _
    $region3: #{_lambda_.12} parent=1 // loop_header
      %s11 = sphi 0, %s15
      %p12 = scmp.ge.s32.totalorder %s11, 10
      %s18 = sphi 0, %s37
      %s19 = sphi 0, %s33
      %s20 = sphi 0, %s29
      %s21 = sphi 0, %s18
      %s22 = sphi 0, %s19
      %s23 = sphi 0, %s20
      %s24 = sphi 0, %s21
      %s25 = sphi 0, %s22
      %s26 = sphi 0, %s23
      %s44 = sphi 0, %s46
      %s47 = sphi 0, %s44
      %s48 = sphi 0, %s47
      %s64 = sphi 0, %s48
      %s72 = sphi 0, %s74
      %s75 = sphi 0, %s72
      %s76 = sphi 0, %s75
      %s92 = sphi 0, %s76
      %s102 = sphi 0, %s104
      %s105 = sphi 0, %s102
      %s106 = sphi 0, %s105
      %s122 = sphi 0, %s106
    $region4: #{_lambda_.12} parent=1 // loop_header_branch
      %14 = sbr.rel (%p12) target = $region8
    $region5: #{_lambda_.12} parent=1 // loop_body
      %s16 = ssub.s32 %s11, 1
      %s17 = ssub.s32 %s11, 2
      %s27 = sadd.s32 1, %s20
      %p28 = scmp.ge.s32.totalorder %s27, 1
      %s29 = scalar_select %p28, 0, %s27
      %s30 = sadd.s32 1, %s19
      %s31 = scalar_select %p28, %s30, %s19
      %p32 = scmp.ge.s32.totalorder %s31, 4
      %s33 = scalar_select %p32, 0, %s31
      %s34 = sadd.s32 1, %s18
      %s35 = scalar_select %p32, %s34, %s18
      %p36 = scmp.ge.s32.totalorder %s35, 2
      %s37 = scalar_select %p36, 0, %s35
      %s38 = ssub.s32 %s18, %s37
      %s39 = ssub.s32 %s19, %s33
      %s40 = sor.u32 %s38, %s39
      %s41 = ssub.s32 %s20, %s29
      %s42 = sor.u32 %s40, %s41
      %p43 = scmp.eq.s32.totalorder %s42, 0
      %s45 = sadd.s32 %s44, 1
      %s46 = scalar_select %p43, %s44, %s45
      %p49 = pneg %p43
      %p50 = scmp.eq.s32.totalorder %s11, 7
      %p51 = por %p49, %p50
      %p52 = scmp.ne.s32.totalorder %s44, %s47
      %p53 = scmp.eq.s32.totalorder %s11, 0
      %p54 = por %p52, %p53
      %p55 = scmp.ne.s32.totalorder %s44, %s47
      %p56 = scmp.eq.s32.totalorder %s16, 7
      %p57 = por %p55, %p56
      %p58 = scmp.ne.s32.totalorder %s47, %s48
      %p59 = scmp.eq.s32.totalorder %s16, 0
      %p60 = por %p58, %p59
      %p61 = scmp.ne.s32.totalorder %s47, %s48
      %p62 = scmp.eq.s32.totalorder %s17, 7
      %p63 = por %p61, %p62
      %p65 = scmp.ne.s32.totalorder %s48, %s64
      %p66 = scmp.eq.s32.totalorder %s17, 0
      %p67 = por %p65, %p66
      %s68 = ssub.s32 %s18, %s37
      %s69 = ssub.s32 %s19, %s33
      %s70 = sor.u32 %s68, %s69
      %p71 = scmp.eq.s32.totalorder %s70, 0
      %s73 = sadd.s32 %s72, 1
      %s74 = scalar_select %p71, %s72, %s73
      %p77 = pneg %p71
      %p78 = scmp.eq.s32.totalorder %s11, 7
      %p79 = por %p77, %p78
      %p80 = scmp.ne.s32.totalorder %s72, %s75
      %p81 = scmp.eq.s32.totalorder %s11, 0
      %p82 = por %p80, %p81
      %p83 = scmp.ne.s32.totalorder %s72, %s75
      %p84 = scmp.eq.s32.totalorder %s16, 7
      %p85 = por %p83, %p84
      %p86 = scmp.ne.s32.totalorder %s75, %s76
      %p87 = scmp.eq.s32.totalorder %s16, 0
      %p88 = por %p86, %p87
      %p89 = scmp.ne.s32.totalorder %s75, %s76
      %p90 = scmp.eq.s32.totalorder %s17, 7
      %p91 = por %p89, %p90
      %p93 = scmp.ne.s32.totalorder %s76, %s92
      %p94 = scmp.eq.s32.totalorder %s17, 0
      %p95 = por %p93, %p94
      %s96 = ssub.s32 %s18, %s37
      %s97 = ssub.s32 %s19, %s33
      %s98 = sor.u32 %s96, %s97
      %s99 = ssub.s32 %s20, %s29
      %s100 = sor.u32 %s98, %s99
      %p101 = scmp.eq.s32.totalorder %s100, 0
      %s103 = sadd.s32 %s102, 1
      %s104 = scalar_select %p101, %s102, %s103
      %p107 = pneg %p101
      %p108 = scmp.eq.s32.totalorder %s11, 7
      %p109 = por %p107, %p108
      %p110 = scmp.ne.s32.totalorder %s102, %s105
      %p111 = scmp.eq.s32.totalorder %s11, 0
      %p112 = por %p110, %p111
      %p113 = scmp.ne.s32.totalorder %s102, %s105
      %p114 = scmp.eq.s32.totalorder %s16, 7
      %p115 = por %p113, %p114
      %p116 = scmp.ne.s32.totalorder %s105, %s106
      %p117 = scmp.eq.s32.totalorder %s16, 0
      %p118 = por %p116, %p117
      %p119 = scmp.ne.s32.totalorder %s105, %s106
      %p120 = scmp.eq.s32.totalorder %s17, 7
      %p121 = por %p119, %p120
      %p123 = scmp.ne.s32.totalorder %s106, %s122
      %p124 = scmp.eq.s32.totalorder %s17, 0
      %p125 = por %p123, %p124
      %p126 = scmp.le.s32.totalorder 1, %s11
      %p127 = scmp.lt.s32.totalorder %s11, 9
      %p128 = pnand %p126, %p127
      %p129 = pneg %p128
      // Predicated region
      $region9: #{_lambda_.12} parent=5 // pred_check
        _
      $region10: #{_lambda_.12} parent=5 // pred_check_branch
        %131 = sbr.rel (%p128) target = $region12
      $region11: #{_lambda_.12} parent=5 // pred_region
        %s132 = ssub.s32 %s11, 1
      $region12: #{_lambda_.12} parent=5 // pred_fallthru
        _
      %p133 = scmp.lt.s32.totalorder %s11, 8
      // Predicated region
      $region13: #{_lambda_.12} parent=5 // pred_check
        %p134 = pneg %p133
      $region14: #{_lambda_.12} parent=5 // pred_check_branch
        %136 = sbr.rel (%p134) target = $region16
      $region15: #{_lambda_.12} parent=5 // pred_region
        // Predicated region
        $region17: #{_lambda_.12} parent=15 // pred_check
          %p137 = pneg %p54
        $region18: #{_lambda_.12} parent=15 // pred_check_branch
          %139 = sbr.rel (%p137) target = $region20
        $region19: #{_lambda_.12} parent=15 // pred_region
          %p140 = scmp.lt.s32.totalorder %s18, 1
          %s141 = scalar_select %p140, %s18, 1
          %p142 = scmp.lt.s32.totalorder %s19, 3
          %s143 = scalar_select %p142, %s19, 3
          %p144 = scmp.lt.s32.totalorder %s20, 0
          %s145 = scalar_select %p144, %s20, 0
          %s146 = sadd.s32 %s145, %s143
          %s147 = smul.addr %s141, 4
          %s148 = sadd.s32 %s146, %s147
          %s149 = smul.addr %s148, 4
          %s150 = scalar_lea.vmem %s0, %s149
        $region20: #{_lambda_.12} parent=15 // pred_fallthru
          _
        // Predicated region
        $region21: #{_lambda_.12} parent=15 // pred_check
          %p151 = pneg %p82
        $region22: #{_lambda_.12} parent=15 // pred_check_branch
          %153 = sbr.rel (%p151) target = $region24
        $region23: #{_lambda_.12} parent=15 // pred_region
          %p154 = scmp.lt.s32.totalorder %s18, 1
          %s155 = scalar_select %p154, %s18, 1
          %p156 = scmp.lt.s32.totalorder %s19, 3
          %s157 = scalar_select %p156, %s19, 3
          %s158 = smul.addr %s155, 4
          %s159 = sadd.s32 %s157, %s158
          %s160 = smul.addr %s159, 4
          %s161 = scalar_lea.vmem %s1, %s160
        $region24: #{_lambda_.12} parent=15 // pred_fallthru
          _
      $region16: #{_lambda_.12} parent=5 // pred_fallthru
        _
      %p162 = scmp.le.s32.totalorder 1, %s11
      %p163 = scmp.lt.s32.totalorder %s11, 9
      %p164 = pnand %p162, %p163
      %p165 = pneg %p164
      // Predicated region
      $region25: #{_lambda_.12} parent=5 // pred_check
        _
      $region26: #{_lambda_.12} parent=5 // pred_check_branch
        %167 = sbr.rel (%p164) target = $region28
      $region27: #{_lambda_.12} parent=5 // pred_region
        %s168 = ssub.s32 %s11, 1
        %p169 = scmp.lt.s32.totalorder %s21, 1
        %s170 = scalar_select %p169, %s21, 1
        %p171 = scmp.lt.s32.totalorder %s22, 3
        %s172 = scalar_select %p171, %s22, 3
        %p173 = scmp.lt.s32.totalorder %s23, 0
        %s174 = scalar_select %p173, %s23, 0
        %s175 = sadd.s32 %s174, %s172
        %s176 = smul.addr %s170, 4
        %s177 = sadd.s32 %s175, %s176
        %s178 = smul.addr %s177, 4
        %s179 = scalar_lea.vmem %s0, %s178
        %p180 = pneg %p60
        %p181 = pneg %p57
        %p182 = scmp.lt.s32.totalorder %s21, 1
        %s183 = scalar_select %p182, %s21, 1
        %p184 = scmp.lt.s32.totalorder %s22, 3
        %s185 = scalar_select %p184, %s22, 3
        %s186 = smul.addr %s183, 4
        %s187 = sadd.s32 %s185, %s186
        %s188 = smul.addr %s187, 4
        %s189 = scalar_lea.vmem %s1, %s188
        %p190 = pneg %p88
        %p191 = pneg %p85
        %p192 = pneg %p118
        %p193 = pneg %p115
        %s194 = sand.u32 %s105, 1
        %s195 = scalar_lea.sflag [#allocation3], %s194
        %s196 = sand.u32 %s105, 1
        %s197 = smul.addr %s196, 4
        %s198 = scalar_lea.vmem [#allocation2], %s197
        %p199 = scmp.lt.s32.totalorder %s21, 1
        %s200 = scalar_select %p199, %s21, 1
        %p201 = scmp.lt.s32.totalorder %s22, 3
        %s202 = scalar_select %p201, %s22, 3
        %p203 = scmp.lt.s32.totalorder %s23, 0
        %s204 = scalar_select %p203, %s23, 0
        %s205 = sadd.s32 %s204, %s202
        %s206 = smul.addr %s200, 4
        %s207 = sadd.s32 %s205, %s206
        %s208 = smul.addr %s207, 4
        %s209 = scalar_lea.vmem %s0, %s208
        %p210 = scmp.lt.s32.totalorder %s21, 1
        %s211 = scalar_select %p210, %s21, 1
        %p212 = scmp.lt.s32.totalorder %s22, 3
        %s213 = scalar_select %p212, %s22, 3
        %s214 = smul.addr %s211, 4
        %s215 = sadd.s32 %s213, %s214
        %s216 = smul.addr %s215, 4
        %s217 = scalar_lea.vmem %s1, %s216
        %v219 = vld [vmem:[%s209] sm:$0xf]
        %v220 = vld [vmem:[%s217] sm:$0xf]
        %vm221 = vcmask 64512
        %v223 = vsel %vm221, %v219, 0
        %v226 = vsel %vm221, %v220, 0
        %228 = vmatpush.bf16.xpose.msra.mxu0 0
        %229 = vmatpush.bf16.xpose.msra.mxu0 0
        %230 = vmatpush.bf16.xpose.msra.mxu0 0
        %231 = vmatpush.bf16.xpose.msra.mxu0 0
        %232 = vmatpush.bf16.xpose.msra.mxu0 0
        %233 = vmatpush.bf16.xpose.msra.mxu0 0
        %234 = vmatpush.bf16.xpose.msra.mxu0 0
        %235 = vmatpush.bf16.xpose.msra.mxu0 %v226
        %236 = vmatmul.bf16.gmra.mxu0 %v223
        %v237 = vpop.f32.mrf.mxu0
        %v238 = vadd.f32 0.0, %v237
        %v239 = vpop.f32.mrf.mxu0
        %240 = vdwg.mxu0
        %v241 = vsel %vm221, %v238, -inf
        %242 = vmax.xlane.f32.xlu0 %v241
        %v243 = vpop.xlane.xlu0 %242
        %v244 = vsub.f32 %v238, %v243
        %v245 = vmul.f32 %v244, 1.442695
        %v246 = vpow.pop %v245
        %v247 = vsel %vm221, %v246, 0.0
        %248 = vadd.xlane.f32.xlu0 %v247
        %v249 = vpop.xlane.xlu0 %248
        %v250 = vrcp.pop %v249
        %v251 = vmul.f32 %v249, %v250
        %v252 = vsub.f32 1.0, %v251
        %v253 = vmul.f32 %v250, %v252
        %v254 = vadd.f32 %v250, %v253
        %vm255 = vweird.f32 %v249
        %vm256 = vweird.f32 %v250
        %vm257 = vmor %vm255, %vm256
        %v258 = vsel %vm257, %v250, %v254
        %v259 = vand.u32 2147483647, %v249
        %vm260 = vcmp.eq.f32.partialorder %v259, 8.507059e+37
        %v261 = vand.u32 %v249, 2147483648
        %v262 = vor.u32 1.1754944e-38, %v261
        %v263 = vsel %vm260, %v262, %v258
        %v264 = vmul.f32 %v246, %v263
        %v265 = vpack.c.bf16 %v264, %v264
        %vm266 = vcmask 60416
        %267 = vst.msk [vmem:[%s198] sm:$0xf] %vm266, %v265
        %s268 = sand.u32 %s105, 1
        %s269 = scalar_lea.sflag [#allocation3], %s268
        %s270 = sand.u32 %s105, 1
        %s271 = smul.addr %s270, 4
        %s272 = scalar_lea.vmem [#allocation2], %s271
        // Predicated region
        $region29: #{_lambda_.12} parent=27 // pred_check
          %p273 = pneg %p115
        $region30: #{_lambda_.12} parent=27 // pred_check_branch
          %275 = sbr.rel (%p273) target = $region32
        $region31: #{_lambda_.12} parent=27 // pred_region
          %277 = vsyncadd %s269, 0
          %s278 = sadd.s32 %s23, %s22
          %s279 = smul.addr %s21, 4
          %s280 = sadd.s32 %s278, %s279
          %s281 = smul.addr %s280, 4
          %s282 = scalar_lea.hbm %s2, %s281
          %s284 = sshll.u32 %s272, 4
          %s285 = int_to_ptr.vmem [resolvable:$true] %s284
          %s286 = sshll.u32 %s282, 4
          %s287 = int_to_ptr.hbm [resolvable:$true] %s286
          %289 = dma.vmem_to_hbm [thread:$0]  %s285, 64, %s287, %s269
        $region32: #{_lambda_.12} parent=27 // pred_fallthru
          _
      $region28: #{_lambda_.12} parent=5 // pred_fallthru
        _
      %p290 = scmp.le.s32.totalorder 2, %s11
      // Predicated region
      $region33: #{_lambda_.12} parent=5 // pred_check
        %p291 = pneg %p290
      $region34: #{_lambda_.12} parent=5 // pred_check_branch
        %293 = sbr.rel (%p291) target = $region36
      $region35: #{_lambda_.12} parent=5 // pred_region
        %s294 = ssub.s32 %s11, 2
        // Predicated region
        $region37: #{_lambda_.12} parent=35 // pred_check
          %p295 = pneg %p121
        $region38: #{_lambda_.12} parent=35 // pred_check_branch
          %297 = sbr.rel (%p295) target = $region40
        $region39: #{_lambda_.12} parent=35 // pred_region
          %s298 = sand.u32 %s106, 1
          %s299 = scalar_lea.sflag [#allocation3], %s298
          %s300 = sand.u32 %s106, 1
          %s301 = smul.addr %s300, 4
          %s302 = scalar_lea.vmem [#allocation2], %s301
          %304 = dma.done %s299, 64
        $region40: #{_lambda_.12} parent=35 // pred_fallthru
          _
      $region36: #{_lambda_.12} parent=5 // pred_fallthru
        _
    $region6: #{_lambda_.12} parent=1 // loop_footer
      %s15 = sadd.s32 1, %s11
    $region7: #{_lambda_.12} parent=1 // loop_footer_branch
      %10 = sbr.rel target = $region3
    $region8: #{_lambda_.12} parent=1 // loop_exit
      _
    %305 = vsyncpa [#allocation3], 1
    %s306 = scalar_lea.sflag [#allocation3], 1
    %307 = vsyncpa %s306, 1

// kernel: _lambda_.11
$region0: #{_lambda_.11}
  #allocation0 [shape = 'u32[]', space=smem, size = 0x4, offset = 0x4, fixed_abs, tag = 'smem constant byte address 0x4 - core index']
  #allocation1 [shape = 'u32[72,128]{1,0:T(1,128)}', space=vmem, size = 0x9000, scoped, tag = 'internal scratch']
  #allocation2 [shape = 'f32[8,1]{1,0:T(8,128)}', space=vmem, size = 0x1000, scoped, tag = 'scratch operand']
  #allocation3 [shape = 'f32[8,1]{1,0:T(8,128)}', space=vmem, size = 0x1000, scoped, tag = 'scratch operand']
  #allocation4 [shape = 'f32[8,8]{1,0:T(8,128)}', space=vmem, size = 0x1000, scoped, tag = 'scratch operand']
  %s0 = inlined_call_operand.vmem [shape: bf16[2,4,8,8], index: 0, kind: input, shape index: {}]
  %s1 = inlined_call_operand.vmem [shape: bf16[2,4,8,8], index: 1, kind: input, shape index: {}]
  %s2 = inlined_call_operand.vmem [shape: bf16[2,4,8,8], index: 2, kind: input, shape index: {}]
  %s3 = inlined_call_operand.vmem [shape: bf16[2,4,8,8], index: 3, kind: output, shape index: {}]
  %s4 = sld [smem:[#allocation0]]
  $region53: #{_lambda_.11} parent=0
    _
  %s6 = ssub.s32 1, %s4
  %s7 = scalar_select 0, %s6, %s4
  loop: start=0, step=1, limit=10
  $region2: #{_lambda_.11} parent=0 // loop_pre_header
    _
  $region3: #{_lambda_.11} parent=0 // loop_header
    %s9 = sphi 0, %s13
    %p10 = scmp.ge.s32.totalorder %s9, 10
    %s16 = sphi 0, %s42
    %s17 = sphi 0, %s38
    %s18 = sphi 0, %s34
    %s19 = sphi 0, %s30
    %s20 = sphi 0, %s16
    %s21 = sphi 0, %s17
    %s22 = sphi 0, %s18
    %s23 = sphi 0, %s19
    %s24 = sphi 0, %s20
    %s25 = sphi 0, %s21
    %s26 = sphi 0, %s22
    %s27 = sphi 0, %s23
    %s49 = sphi 0, %s51
    %s52 = sphi 0, %s49
    %s53 = sphi 0, %s52
    %s69 = sphi 0, %s53
    %s79 = sphi 0, %s81
    %s82 = sphi 0, %s79
    %s83 = sphi 0, %s82
    %s99 = sphi 0, %s83
    %s109 = sphi 0, %s111
    %s112 = sphi 0, %s109
    %s113 = sphi 0, %s112
    %s129 = sphi 0, %s113
    %s139 = sphi 0, %s141
    %s142 = sphi 0, %s139
    %s143 = sphi 0, %s142
    %s159 = sphi 0, %s143
  $region4: #{_lambda_.11} parent=0 // loop_header_branch
    %12 = sbr.rel (%p10) target = $region8
  $region5: #{_lambda_.11} parent=0 // loop_body
    %s14 = ssub.s32 %s9, 1
    %s15 = ssub.s32 %s9, 2
    %s28 = sadd.s32 1, %s19
    %p29 = scmp.ge.s32.totalorder %s28, 1
    %s30 = scalar_select %p29, 0, %s28
    %s31 = sadd.s32 1, %s18
    %s32 = scalar_select %p29, %s31, %s18
    %p33 = scmp.ge.s32.totalorder %s32, 1
    %s34 = scalar_select %p33, 0, %s32
    %s35 = sadd.s32 1, %s17
    %s36 = scalar_select %p33, %s35, %s17
    %p37 = scmp.ge.s32.totalorder %s36, 4
    %s38 = scalar_select %p37, 0, %s36
    %s39 = sadd.s32 1, %s16
    %s40 = scalar_select %p37, %s39, %s16
    %p41 = scmp.ge.s32.totalorder %s40, 2
    %s42 = scalar_select %p41, 0, %s40
    %s43 = ssub.s32 %s16, %s42
    %s44 = ssub.s32 %s17, %s38
    %s45 = sor.u32 %s43, %s44
    %s46 = ssub.s32 %s18, %s34
    %s47 = sor.u32 %s45, %s46
    %p48 = scmp.eq.s32.totalorder %s47, 0
    %s50 = sadd.s32 %s49, 1
    %s51 = scalar_select %p48, %s49, %s50
    %p54 = pneg %p48
    %p55 = scmp.eq.s32.totalorder %s9, 7
    %p56 = por %p54, %p55
    %p57 = scmp.ne.s32.totalorder %s49, %s52
    %p58 = scmp.eq.s32.totalorder %s9, 0
    %p59 = por %p57, %p58
    %p60 = scmp.ne.s32.totalorder %s49, %s52
    %p61 = scmp.eq.s32.totalorder %s14, 7
    %p62 = por %p60, %p61
    %p63 = scmp.ne.s32.totalorder %s52, %s53
    %p64 = scmp.eq.s32.totalorder %s14, 0
    %p65 = por %p63, %p64
    %p66 = scmp.ne.s32.totalorder %s52, %s53
    %p67 = scmp.eq.s32.totalorder %s15, 7
    %p68 = por %p66, %p67
    %p70 = scmp.ne.s32.totalorder %s53, %s69
    %p71 = scmp.eq.s32.totalorder %s15, 0
    %p72 = por %p70, %p71
    %s73 = ssub.s32 %s16, %s42
    %s74 = ssub.s32 %s17, %s38
    %s75 = sor.u32 %s73, %s74
    %s76 = ssub.s32 %s19, %s30
    %s77 = sor.u32 %s75, %s76
    %p78 = scmp.eq.s32.totalorder %s77, 0
    %s80 = sadd.s32 %s79, 1
    %s81 = scalar_select %p78, %s79, %s80
    %p84 = pneg %p78
    %p85 = scmp.eq.s32.totalorder %s9, 7
    %p86 = por %p84, %p85
    %p87 = scmp.ne.s32.totalorder %s79, %s82
    %p88 = scmp.eq.s32.totalorder %s9, 0
    %p89 = por %p87, %p88
    %p90 = scmp.ne.s32.totalorder %s79, %s82
    %p91 = scmp.eq.s32.totalorder %s14, 7
    %p92 = por %p90, %p91
    %p93 = scmp.ne.s32.totalorder %s82, %s83
    %p94 = scmp.eq.s32.totalorder %s14, 0
    %p95 = por %p93, %p94
    %p96 = scmp.ne.s32.totalorder %s82, %s83
    %p97 = scmp.eq.s32.totalorder %s15, 7
    %p98 = por %p96, %p97
    %p100 = scmp.ne.s32.totalorder %s83, %s99
    %p101 = scmp.eq.s32.totalorder %s15, 0
    %p102 = por %p100, %p101
    %s103 = ssub.s32 %s16, %s42
    %s104 = ssub.s32 %s17, %s38
    %s105 = sor.u32 %s103, %s104
    %s106 = ssub.s32 %s19, %s30
    %s107 = sor.u32 %s105, %s106
    %p108 = scmp.eq.s32.totalorder %s107, 0
    %s110 = sadd.s32 %s109, 1
    %s111 = scalar_select %p108, %s109, %s110
    %p114 = pneg %p108
    %p115 = scmp.eq.s32.totalorder %s9, 7
    %p116 = por %p114, %p115
    %p117 = scmp.ne.s32.totalorder %s109, %s112
    %p118 = scmp.eq.s32.totalorder %s9, 0
    %p119 = por %p117, %p118
    %p120 = scmp.ne.s32.totalorder %s109, %s112
    %p121 = scmp.eq.s32.totalorder %s14, 7
    %p122 = por %p120, %p121
    %p123 = scmp.ne.s32.totalorder %s112, %s113
    %p124 = scmp.eq.s32.totalorder %s14, 0
    %p125 = por %p123, %p124
    %p126 = scmp.ne.s32.totalorder %s112, %s113
    %p127 = scmp.eq.s32.totalorder %s15, 7
    %p128 = por %p126, %p127
    %p130 = scmp.ne.s32.totalorder %s113, %s129
    %p131 = scmp.eq.s32.totalorder %s15, 0
    %p132 = por %p130, %p131
    %s133 = ssub.s32 %s16, %s42
    %s134 = ssub.s32 %s17, %s38
    %s135 = sor.u32 %s133, %s134
    %s136 = ssub.s32 %s18, %s34
    %s137 = sor.u32 %s135, %s136
    %p138 = scmp.eq.s32.totalorder %s137, 0
    %s140 = sadd.s32 %s139, 1
    %s141 = scalar_select %p138, %s139, %s140
    %p144 = pneg %p138
    %p145 = scmp.eq.s32.totalorder %s9, 7
    %p146 = por %p144, %p145
    %p147 = scmp.ne.s32.totalorder %s139, %s142
    %p148 = scmp.eq.s32.totalorder %s9, 0
    %p149 = por %p147, %p148
    %p150 = scmp.ne.s32.totalorder %s139, %s142
    %p151 = scmp.eq.s32.totalorder %s14, 7
    %p152 = por %p150, %p151
    %p153 = scmp.ne.s32.totalorder %s142, %s143
    %p154 = scmp.eq.s32.totalorder %s14, 0
    %p155 = por %p153, %p154
    %p156 = scmp.ne.s32.totalorder %s142, %s143
    %p157 = scmp.eq.s32.totalorder %s15, 7
    %p158 = por %p156, %p157
    %p160 = scmp.ne.s32.totalorder %s143, %s159
    %p161 = scmp.eq.s32.totalorder %s15, 0
    %p162 = por %p160, %p161
    %p163 = scmp.le.s32.totalorder 1, %s9
    %p164 = scmp.lt.s32.totalorder %s9, 9
    %p165 = pnand %p163, %p164
    %p166 = pneg %p165
    // Predicated region
    $region9: #{_lambda_.11} parent=5 // pred_check
      _
    $region10: #{_lambda_.11} parent=5 // pred_check_branch
      %168 = sbr.rel (%p165) target = $region12
    $region11: #{_lambda_.11} parent=5 // pred_region
      %s169 = ssub.s32 %s9, 1
    $region12: #{_lambda_.11} parent=5 // pred_fallthru
      _
    %p170 = scmp.lt.s32.totalorder %s9, 8
    // Predicated region
    $region13: #{_lambda_.11} parent=5 // pred_check
      %p171 = pneg %p170
    $region14: #{_lambda_.11} parent=5 // pred_check_branch
      %173 = sbr.rel (%p171) target = $region16
    $region15: #{_lambda_.11} parent=5 // pred_region
      // Predicated region
      $region17: #{_lambda_.11} parent=15 // pred_check
        %p174 = pneg %p59
      $region18: #{_lambda_.11} parent=15 // pred_check_branch
        %176 = sbr.rel (%p174) target = $region20
      $region19: #{_lambda_.11} parent=15 // pred_region
        %p177 = scmp.lt.s32.totalorder %s16, 1
        %s178 = scalar_select %p177, %s16, 1
        %p179 = scmp.lt.s32.totalorder %s17, 3
        %s180 = scalar_select %p179, %s17, 3
        %p181 = scmp.lt.s32.totalorder %s18, 0
        %s182 = scalar_select %p181, %s18, 0
        %s183 = sadd.s32 %s182, %s180
        %s184 = smul.addr %s178, 4
        %s185 = sadd.s32 %s183, %s184
        %s186 = smul.addr %s185, 4
        %s187 = scalar_lea.vmem %s0, %s186
      $region20: #{_lambda_.11} parent=15 // pred_fallthru
        _
      // Predicated region
      $region21: #{_lambda_.11} parent=15 // pred_check
        %p188 = pneg %p89
      $region22: #{_lambda_.11} parent=15 // pred_check_branch
        %190 = sbr.rel (%p188) target = $region24
      $region23: #{_lambda_.11} parent=15 // pred_region
        %p191 = scmp.lt.s32.totalorder %s16, 1
        %s192 = scalar_select %p191, %s16, 1
        %p193 = scmp.lt.s32.totalorder %s17, 3
        %s194 = scalar_select %p193, %s17, 3
        %p195 = scmp.lt.s32.totalorder %s19, 0
        %s196 = scalar_select %p195, %s19, 0
        %s197 = sadd.s32 %s196, %s194
        %s198 = smul.addr %s192, 4
        %s199 = sadd.s32 %s197, %s198
        %s200 = smul.addr %s199, 4
        %s201 = scalar_lea.vmem %s1, %s200
      $region24: #{_lambda_.11} parent=15 // pred_fallthru
        _
      // Predicated region
      $region25: #{_lambda_.11} parent=15 // pred_check
        %p202 = pneg %p119
      $region26: #{_lambda_.11} parent=15 // pred_check_branch
        %204 = sbr.rel (%p202) target = $region28
      $region27: #{_lambda_.11} parent=15 // pred_region
        %p205 = scmp.lt.s32.totalorder %s16, 1
        %s206 = scalar_select %p205, %s16, 1
        %p207 = scmp.lt.s32.totalorder %s17, 3
        %s208 = scalar_select %p207, %s17, 3
        %p209 = scmp.lt.s32.totalorder %s19, 0
        %s210 = scalar_select %p209, %s19, 0
        %s211 = sadd.s32 %s210, %s208
        %s212 = smul.addr %s206, 4
        %s213 = sadd.s32 %s211, %s212
        %s214 = smul.addr %s213, 4
        %s215 = scalar_lea.vmem %s2, %s214
      $region28: #{_lambda_.11} parent=15 // pred_fallthru
        _
    $region16: #{_lambda_.11} parent=5 // pred_fallthru
      _
    %p216 = scmp.le.s32.totalorder 1, %s9
    %p217 = scmp.lt.s32.totalorder %s9, 9
    %p218 = pnand %p216, %p217
    %p219 = pneg %p218
    // Predicated region
    $region29: #{_lambda_.11} parent=5 // pred_check
      _
    $region30: #{_lambda_.11} parent=5 // pred_check_branch
      %221 = sbr.rel (%p218) target = $region32
    $region31: #{_lambda_.11} parent=5 // pred_region
      %s222 = ssub.s32 %s9, 1
      %p223 = scmp.lt.s32.totalorder %s20, 1
      %s224 = scalar_select %p223, %s20, 1
      %p225 = scmp.lt.s32.totalorder %s21, 3
      %s226 = scalar_select %p225, %s21, 3
      %p227 = scmp.lt.s32.totalorder %s22, 0
      %s228 = scalar_select %p227, %s22, 0
      %s229 = sadd.s32 %s228, %s226
      %s230 = smul.addr %s224, 4
      %s231 = sadd.s32 %s229, %s230
      %s232 = smul.addr %s231, 4
      %s233 = scalar_lea.vmem %s0, %s232
      %p234 = pneg %p65
      %p235 = pneg %p62
      %p236 = scmp.lt.s32.totalorder %s20, 1
      %s237 = scalar_select %p236, %s20, 1
      %p238 = scmp.lt.s32.totalorder %s21, 3
      %s239 = scalar_select %p238, %s21, 3
      %p240 = scmp.lt.s32.totalorder %s23, 0
      %s241 = scalar_select %p240, %s23, 0
      %s242 = sadd.s32 %s241, %s239
      %s243 = smul.addr %s237, 4
      %s244 = sadd.s32 %s242, %s243
      %s245 = smul.addr %s244, 4
      %s246 = scalar_lea.vmem %s1, %s245
      %p247 = pneg %p95
      %p248 = pneg %p92
      %p249 = scmp.lt.s32.totalorder %s20, 1
      %s250 = scalar_select %p249, %s20, 1
      %p251 = scmp.lt.s32.totalorder %s21, 3
      %s252 = scalar_select %p251, %s21, 3
      %p253 = scmp.lt.s32.totalorder %s23, 0
      %s254 = scalar_select %p253, %s23, 0
      %s255 = sadd.s32 %s254, %s252
      %s256 = smul.addr %s250, 4
      %s257 = sadd.s32 %s255, %s256
      %s258 = smul.addr %s257, 4
      %s259 = scalar_lea.vmem %s2, %s258
      %p260 = pneg %p125
      %p261 = pneg %p122
      %p262 = pneg %p155
      %p263 = pneg %p152
      %p264 = scmp.lt.s32.totalorder %s20, 1
      %s265 = scalar_select %p264, %s20, 1
      %p266 = scmp.lt.s32.totalorder %s21, 3
      %s267 = scalar_select %p266, %s21, 3
      %p268 = scmp.lt.s32.totalorder %s22, 0
      %s269 = scalar_select %p268, %s22, 0
      %s270 = sadd.s32 %s269, %s267
      %s271 = smul.addr %s265, 4
      %s272 = sadd.s32 %s270, %s271
      %s273 = smul.addr %s272, 4
      %s274 = scalar_lea.vmem %s3, %s273
      %p275 = scmp.lt.s32.totalorder %s20, 1
      %s276 = scalar_select %p275, %s20, 1
      %p277 = scmp.lt.s32.totalorder %s21, 3
      %s278 = scalar_select %p277, %s21, 3
      %p279 = scmp.lt.s32.totalorder %s22, 0
      %s280 = scalar_select %p279, %s22, 0
      %s281 = sadd.s32 %s280, %s278
      %s282 = smul.addr %s276, 4
      %s283 = sadd.s32 %s281, %s282
      %s284 = smul.addr %s283, 4
      %s285 = scalar_lea.vmem %s0, %s284
      %p286 = scmp.lt.s32.totalorder %s20, 1
      %s287 = scalar_select %p286, %s20, 1
      %p288 = scmp.lt.s32.totalorder %s21, 3
      %s289 = scalar_select %p288, %s21, 3
      %p290 = scmp.lt.s32.totalorder %s23, 0
      %s291 = scalar_select %p290, %s23, 0
      %s292 = sadd.s32 %s291, %s289
      %s293 = smul.addr %s287, 4
      %s294 = sadd.s32 %s292, %s293
      %s295 = smul.addr %s294, 4
      %s296 = scalar_lea.vmem %s1, %s295
      %p297 = scmp.lt.s32.totalorder %s20, 1
      %s298 = scalar_select %p297, %s20, 1
      %p299 = scmp.lt.s32.totalorder %s21, 3
      %s300 = scalar_select %p299, %s21, 3
      %p301 = scmp.lt.s32.totalorder %s23, 0
      %s302 = scalar_select %p301, %s23, 0
      %s303 = sadd.s32 %s302, %s300
      %s304 = smul.addr %s298, 4
      %s305 = sadd.s32 %s303, %s304
      %s306 = smul.addr %s305, 4
      %s307 = scalar_lea.vmem %s2, %s306
      %p308 = scmp.lt.s32.totalorder %s20, 1
      %s309 = scalar_select %p308, %s20, 1
      %p310 = scmp.lt.s32.totalorder %s21, 3
      %s311 = scalar_select %p310, %s21, 3
      %p312 = scmp.lt.s32.totalorder %s22, 0
      %s313 = scalar_select %p312, %s22, 0
      %s314 = sadd.s32 %s313, %s311
      %s315 = smul.addr %s309, 4
      %s316 = sadd.s32 %s314, %s315
      %s317 = smul.addr %s316, 4
      %s318 = scalar_lea.vmem %s3, %s317
      %p320 = scmp.eq.s32.totalorder %s23, 0
      // Predicated region
      $region33: #{_lambda_.11} parent=31 // pred_check
        %p321 = pneg %p320
      $region34: #{_lambda_.11} parent=31 // pred_check_branch
        %323 = sbr.rel (%p321) target = $region36
      $region35: #{_lambda_.11} parent=31 // pred_region
        %vm324 = vcmask 7168
        %325 = vst.msk [vmem:[#allocation2] sm:$0xff] %vm324, -inf
        %326 = vst.msk [vmem:[#allocation3] sm:$0xff] %vm324, 0.0
        %vm327 = vcmask 64512
        %328 = vst.msk [vmem:[#allocation4] sm:$0xff] %vm327, 0.0
      $region36: #{_lambda_.11} parent=31 // pred_fallthru
        _
      %v329 = vld [vmem:[%s285] sm:$0xf]
      %v330 = vld [vmem:[%s296] sm:$0xf]
      %v331 = vld [vmem:[%s307] sm:$0xf]
      %vm332 = vcmask 64512
      %v334 = vsel %vm332, %v329, 0
      %v337 = vsel %vm332, %v330, 0
      %339 = vmatpush.bf16.xpose.msra.mxu0 0
      %340 = vmatpush.bf16.xpose.msra.mxu0 0
      %341 = vmatpush.bf16.xpose.msra.mxu0 0
      %342 = vmatpush.bf16.xpose.msra.mxu0 0
      %343 = vmatpush.bf16.xpose.msra.mxu0 0
      %344 = vmatpush.bf16.xpose.msra.mxu0 0
      %345 = vmatpush.bf16.xpose.msra.mxu0 0
      %346 = vmatpush.bf16.xpose.msra.mxu0 %v337
      %347 = vmatmul.bf16.gmra.mxu0 %v334
      %v348 = vpop.f32.mrf.mxu0
      %v349 = vadd.f32 0.0, %v348
      %v350 = vpop.f32.mrf.mxu0
      %351 = vdwg.mxu0
      %v352 = vld [vmem:[#allocation2] sm:$0xff]
      %v353 = vsel %vm332, %v349, -inf
      %354 = vmax.xlane.f32.xlu0 %v353
      %v355 = vpop.xlane.xlu0 %354
      %v356 = vmax.f32 %v352, %v355
      %v357 = vsub.f32 %v352, %v356
      %v358 = vmul.f32 %v357, 1.442695
      %v359 = vpow.pop %v358
      %361 = vset.pattern.permute.xlu0 0
      %362 = vperm.xlu0 %361, %v356
      %v363 = vpop.permute.xlu0 %362
      %v365 = vsub.f32 %v349, %v363
      %v366 = vmul.f32 %v365, 1.442695
      %v367 = vpow.pop %v366
      %v368 = vld [vmem:[#allocation3] sm:$0xff]
      %v369 = vmul.f32 %v359, %v368
      %v370 = vsel %vm332, %v367, 0.0
      %371 = vadd.xlane.f32.xlu0 %v370
      %v372 = vpop.xlane.xlu0 %371
      %v373 = vadd.f32 %v369, %v372
      %vm374 = vcmask 7168
      %375 = vst.msk [vmem:[#allocation3] sm:$0xff] %vm374, %v373
      %v376 = vld [vmem:[#allocation4] sm:$0xff]
      %378 = vset.pattern.permute.xlu0 0
      %379 = vperm.xlu0 %378, %v359
      %v380 = vpop.permute.xlu0 %379
      %v382 = vmul.f32 %v380, %v376
      %v383 = vpack.c.bf16 %v367, %v367
      %v385 = vsel %vm332, %v383, 0
      %vm387 = vcmask 1043456
      %v389 = vsel %vm387, %v331, 0
      %391 = vmatpush.bf16.msra.mxu0 0
      %392 = vmatpush.bf16.msra.mxu0 0
      %393 = vmatpush.bf16.msra.mxu0 0
      %394 = vmatpush.bf16.msra.mxu0 0
      %395 = vmatpush.bf16.msra.mxu0 0
      %396 = vmatpush.bf16.msra.mxu0 0
      %397 = vmatpush.bf16.msra.mxu0 0
      %398 = vmatpush.bf16.msra.mxu0 %v389
      %399 = vmatmul.bf16.gmra.mxu0 %v385
      %v400 = vpop.f32.mrf.mxu0
      %v401 = vadd.f32 0.0, %v400
      %v402 = vpop.f32.mrf.mxu0
      %403 = vdwg.mxu0
      %v404 = vadd.f32 %v382, %v401
      %405 = vst.msk [vmem:[#allocation4] sm:$0xff] %vm332, %v404
      %406 = vst.msk [vmem:[#allocation2] sm:$0xff] %vm374, %v356
      // Predicated region
      $region37: #{_lambda_.11} parent=31 // pred_check
        %p407 = pneg %p320
      $region38: #{_lambda_.11} parent=31 // pred_check_branch
        %409 = sbr.rel (%p407) target = $region40
      $region39: #{_lambda_.11} parent=31 // pred_region
        %v410 = vld [vmem:[#allocation4] sm:$0xff]
        %v411 = vld [vmem:[#allocation3] sm:$0xff]
        %413 = vset.pattern.permute.xlu0 0
        %414 = vperm.xlu0 %413, %v411
        %v415 = vpop.permute.xlu0 %414
        %v417 = vrcp.pop %v415
        %v418 = vmul.f32 %v415, %v417
        %v419 = vsub.f32 1.0, %v418
        %v420 = vmul.f32 %v417, %v419
        %v421 = vadd.f32 %v417, %v420
        %vm422 = vweird.f32 %v415
        %vm423 = vweird.f32 %v417
        %vm424 = vmor %vm422, %vm423
        %v425 = vsel %vm424, %v417, %v421
        %v426 = vand.u32 2147483647, %v415
        %vm427 = vcmp.eq.f32.partialorder %v426, 8.507059e+37
        %v428 = vand.u32 %v415, 2147483648
        %v429 = vor.u32 1.1754944e-38, %v428
        %v430 = vsel %vm427, %v429, %v425
        %v431 = vmul.f32 %v410, %v430
        %v432 = vpack.c.bf16 %v431, %v431
        %vm433 = vcmask 60416
        %434 = vst.msk [vmem:[%s318] sm:$0xf] %vm433, %v432
      $region40: #{_lambda_.11} parent=31 // pred_fallthru
        _
      %p435 = scmp.lt.s32.totalorder %s20, 1
      %s436 = scalar_select %p435, %s20, 1
      %p437 = scmp.lt.s32.totalorder %s21, 3
      %s438 = scalar_select %p437, %s21, 3
      %p439 = scmp.lt.s32.totalorder %s22, 0
      %s440 = scalar_select %p439, %s22, 0
      %s441 = sadd.s32 %s440, %s438
      %s442 = smul.addr %s436, 4
      %s443 = sadd.s32 %s441, %s442
      %s444 = smul.addr %s443, 4
      %s445 = scalar_lea.vmem %s3, %s444
      // Predicated region
      $region41: #{_lambda_.11} parent=31 // pred_check
        %p446 = pneg %p152
      $region42: #{_lambda_.11} parent=31 // pred_check_branch
        %448 = sbr.rel (%p446) target = $region44
      $region43: #{_lambda_.11} parent=31 // pred_region
        _
      $region44: #{_lambda_.11} parent=31 // pred_fallthru
        _
    $region32: #{_lambda_.11} parent=5 // pred_fallthru
      _
    %p449 = scmp.le.s32.totalorder 2, %s9
    // Predicated region
    $region45: #{_lambda_.11} parent=5 // pred_check
      %p450 = pneg %p449
    $region46: #{_lambda_.11} parent=5 // pred_check_branch
      %452 = sbr.rel (%p450) target = $region48
    $region47: #{_lambda_.11} parent=5 // pred_region
      %s453 = ssub.s32 %s9, 2
      // Predicated region
      $region49: #{_lambda_.11} parent=47 // pred_check
        %p454 = pneg %p158
      $region50: #{_lambda_.11} parent=47 // pred_check_branch
        %456 = sbr.rel (%p454) target = $region52
      $region51: #{_lambda_.11} parent=47 // pred_region
        %p457 = scmp.lt.s32.totalorder %s24, 1
        %s458 = scalar_select %p457, %s24, 1
        %p459 = scmp.lt.s32.totalorder %s25, 3
        %s460 = scalar_select %p459, %s25, 3
        %p461 = scmp.lt.s32.totalorder %s26, 0
        %s462 = scalar_select %p461, %s26, 0
        %s463 = sadd.s32 %s462, %s460
        %s464 = smul.addr %s458, 4
        %s465 = sadd.s32 %s463, %s464
        %s466 = smul.addr %s465, 4
        %s467 = scalar_lea.vmem %s3, %s466
      $region52: #{_lambda_.11} parent=47 // pred_fallthru
        _
    $region48: #{_lambda_.11} parent=5 // pred_fallthru
      _
  $region6: #{_lambda_.11} parent=0 // loop_footer
    %s13 = sadd.s32 1, %s9
  $region7: #{_lambda_.11} parent=0 // loop_footer_branch
    %8 = sbr.rel target = $region3
  $region8: #{_lambda_.11} parent=0 // loop_exit
    _

// kernel: _lambda_.13
$region0: #{_lambda_.13}
  #allocation0 [shape = 'u32[]', space=smem, size = 0x4, offset = 0x4, fixed_abs, tag = 'smem constant byte address 0x4 - core index']
  #allocation1 [shape = 'u32[72,128]{1,0:T(1,128)}', space=vmem, size = 0x9000, scoped, tag = 'internal scratch']
  %s0 = inlined_call_operand.vmem [shape: bf16[16,32], index: 0, kind: input, shape index: {}]
  %s1 = inlined_call_operand.vmem [shape: bf16[32,32], index: 1, kind: input, shape index: {}]
  %s2 = inlined_call_operand.vmem [shape: f32[1,32], index: 2, kind: input, shape index: {}]
  %s3 = inlined_call_operand.vmem [shape: bf16[16,32], index: 3, kind: input, shape index: {}]
  %s4 = inlined_call_operand.vmem [shape: f32[1,32], index: 4, kind: input, shape index: {}]
  %s5 = inlined_call_operand.vmem [shape: f32[1,32], index: 5, kind: input, shape index: {}]
  %s6 = inlined_call_operand.vmem [shape: bf16[16,32], index: 6, kind: output, shape index: {}]
  %s7 = sld [smem:[#allocation0]]
  $region34: #{_lambda_.13} parent=0
    _
  %s9 = ssub.s32 1, %s7
  %s10 = scalar_select 0, %s9, %s7
  // Predicated region
  $region2: #{_lambda_.13} parent=0 // pred_check
    _
  $region3: #{_lambda_.13} parent=0 // pred_check_branch
    %12 = sbr.rel (0) target = $region5
  $region4: #{_lambda_.13} parent=0 // pred_region
    _
  $region5: #{_lambda_.13} parent=0 // pred_fallthru
    _
  // Predicated region
  $region6: #{_lambda_.13} parent=0 // pred_check
    _
  $region7: #{_lambda_.13} parent=0 // pred_check_branch
    %14 = sbr.rel (0) target = $region9
  $region8: #{_lambda_.13} parent=0 // pred_region
    _
  $region9: #{_lambda_.13} parent=0 // pred_fallthru
    _
  // Predicated region
  $region10: #{_lambda_.13} parent=0 // pred_check
    _
  $region11: #{_lambda_.13} parent=0 // pred_check_branch
    %16 = sbr.rel (0) target = $region13
  $region12: #{_lambda_.13} parent=0 // pred_region
    _
  $region13: #{_lambda_.13} parent=0 // pred_fallthru
    _
  // Predicated region
  $region14: #{_lambda_.13} parent=0 // pred_check
    _
  $region15: #{_lambda_.13} parent=0 // pred_check_branch
    %18 = sbr.rel (0) target = $region17
  $region16: #{_lambda_.13} parent=0 // pred_region
    _
  $region17: #{_lambda_.13} parent=0 // pred_fallthru
    _
  // Predicated region
  $region18: #{_lambda_.13} parent=0 // pred_check
    _
  $region19: #{_lambda_.13} parent=0 // pred_check_branch
    %20 = sbr.rel (0) target = $region21
  $region20: #{_lambda_.13} parent=0 // pred_region
    _
  $region21: #{_lambda_.13} parent=0 // pred_fallthru
    _
  // Predicated region
  $region22: #{_lambda_.13} parent=0 // pred_check
    _
  $region23: #{_lambda_.13} parent=0 // pred_check_branch
    %22 = sbr.rel (0) target = $region25
  $region24: #{_lambda_.13} parent=0 // pred_region
    _
  $region25: #{_lambda_.13} parent=0 // pred_fallthru
    _
  %v24 = vld [vmem:[%s0] sm:$0xf]
  %v25 = vld [vmem:[%s0 + $0x4] sm:$0xf]
  %v26 = vld [vmem:[%s1] sm:$0xf]
  %v27 = vld [vmem:[%s1 + $0x4] sm:$0xf]
  %v28 = vld [vmem:[%s1 + $0x8] sm:$0xf]
  %v29 = vld [vmem:[%s1 + $0xc] sm:$0xf]
  %v30 = vld [vmem:[%s2] sm:$0x1]
  %v32 = vperm.slane %v30, 0
  %v36 = vunpack.c.l.b16 %v24
  %v37 = vunpack.c.l.b16 %v25
  %v38 = vpack.c.b16 %v37, %v36
  %v43 = vunpack.c.l.b16 %v26
  %v44 = vunpack.c.l.b16 %v27
  %v45 = vunpack.c.l.b16 %v28
  %v46 = vunpack.c.l.b16 %v29
  %v47 = vpack.c.b16 %v44, %v43
  %v48 = vpack.c.b16 %v46, %v45
  %vm51 = vcmask 261120
  %v53 = vsel %vm51, %v38, 0
  %55 = vmatpush.bf16.msra.mxu0 0
  %56 = vmatpush.bf16.msra.mxu0 0
  %57 = vmatpush.bf16.msra.mxu0 0
  %58 = vmatpush.bf16.msra.mxu0 0
  %59 = vmatpush.bf16.msra.mxu0 0
  %60 = vmatpush.bf16.msra.mxu0 0
  %61 = vmatpush.bf16.msra.mxu0 %v48
  %62 = vmatpush.bf16.msra.mxu0 %v47
  %63 = vmatmul.bf16.gmra.mxu0 %v53
  %v64 = vpop.f32.mrf.mxu0
  %v65 = vadd.f32 %v32, %v64
  %v66 = vpop.f32.mrf.mxu0
  %v67 = vadd.f32 %v32, %v66
  %68 = vdwg.mxu0
  %v69 = vld [vmem:[%s3] sm:$0xf]
  %v70 = vld [vmem:[%s3 + $0x4] sm:$0xf]
  %v71 = vunpack.c.l.bf16 %v69
  %v72 = vunpack.c.l.bf16 %v70
  %v73 = vadd.f32 %v71, %v65
  %v74 = vadd.f32 %v72, %v67
  %v75 = vsel %vm51, %v73, 0.0
  %76 = vadd.xlane.f32.xlu0 %v75
  %v77 = vpop.xlane.xlu0 %76
  %v78 = vsel %vm51, %v74, 0.0
  %79 = vadd.xlane.f32.xlu0 %v78
  %v80 = vpop.xlane.xlu0 %79
  %v81 = vrcp.pop 32.0
  %v82 = vmul.f32 32.0, %v81
  %v83 = vsub.f32 1.0, %v82
  %v84 = vmul.f32 %v81, %v83
  %v85 = vadd.f32 %v81, %v84
  %vm86 = vweird.f32 %v81
  %v87 = vsel %vm86, %v81, %v85
  %v88 = vmul.f32 %v77, %v87
  %v89 = vmul.f32 %v80, %v87
  %v90 = vsub.f32 %v73, %v88
  %v91 = vsub.f32 %v74, %v89
  %v92 = vmul.f32 %v90, %v90
  %v93 = vmul.f32 %v91, %v91
  %v94 = vsel %vm51, %v92, 0.0
  %95 = vadd.xlane.f32.xlu0 %v94
  %v96 = vpop.xlane.xlu0 %95
  %v97 = vsel %vm51, %v93, 0.0
  %98 = vadd.xlane.f32.xlu0 %v97
  %v99 = vpop.xlane.xlu0 %98
  %v100 = vmul.f32 %v96, %v87
  %v101 = vmul.f32 %v99, %v87
  %v102 = vadd.f32 %v100, 1e-05
  %v103 = vadd.f32 %v101, 1e-05
  %v104 = vrsqrt.pop %v102
  %v105 = vmul.f32 %v104, %v102
  %v106 = vmul.f32 %v105, %v104
  %v107 = vmul.f32 0.5, %v106
  %v108 = vsub.f32 1.5, %v107
  %v109 = vmul.f32 %v104, %v108
  %vm110 = vweird.f32 %v102
  %vm111 = vweird.f32 %v104
  %vm112 = vmor %vm110, %vm111
  %v113 = vsel %vm112, %v104, %v109
  %v114 = vrsqrt.pop %v103
  %v115 = vmul.f32 %v114, %v103
  %v116 = vmul.f32 %v115, %v114
  %v117 = vmul.f32 0.5, %v116
  %v118 = vsub.f32 1.5, %v117
  %v119 = vmul.f32 %v114, %v118
  %vm120 = vweird.f32 %v103
  %vm121 = vweird.f32 %v114
  %vm122 = vmor %vm120, %vm121
  %v123 = vsel %vm122, %v114, %v119
  %v124 = vmul.f32 %v90, %v113
  %v125 = vmul.f32 %v91, %v123
  %v126 = vld [vmem:[%s4] sm:$0x1]
  %v128 = vperm.slane %v126, 0
  %v130 = vmul.f32 %v124, %v128
  %v131 = vmul.f32 %v125, %v128
  %v132 = vld [vmem:[%s5] sm:$0x1]
  %v134 = vperm.slane %v132, 0
  %v136 = vadd.f32 %v130, %v134
  %v137 = vadd.f32 %v131, %v134
  %v138 = vpack.c.bf16 %v136, %v136
  %v139 = vpack.c.bf16 %v137, %v137
  %vm140 = vcmask 257024
  %141 = vst.msk [vmem:[%s6] sm:$0xf] %vm140, %v138
  %142 = vst.msk [vmem:[%s6 + $0x4] sm:$0xf] %vm140, %v139
  // Predicated region
  $region26: #{_lambda_.13} parent=0 // pred_check
    _
  $region27: #{_lambda_.13} parent=0 // pred_check_branch
    %144 = sbr.rel (0) target = $region29
  $region28: #{_lambda_.13} parent=0 // pred_region
    _
  $region29: #{_lambda_.13} parent=0 // pred_fallthru
    _
  // Predicated region
  $region30: #{_lambda_.13} parent=0 // pred_check
    _
  $region31: #{_lambda_.13} parent=0 // pred_check_branch
    %146 = sbr.rel (0) target = $region33
  $region32: #{_lambda_.13} parent=0 // pred_region
    _
  $region33: #{_lambda_.13} parent=0 // pred_fallthru
    _

// kernel: _lambda_.14
$region0: #{_lambda_.14}
  #allocation0 [shape = 'u32[]', space=smem, size = 0x4, offset = 0x4, fixed_abs, tag = 'smem constant byte address 0x4 - core index']
  #allocation1 [shape = 'u32[72,128]{1,0:T(1,128)}', space=vmem, size = 0x9000, scoped, tag = 'internal scratch']
  #allocation2 [shape = 'f32[16,32]{1,0:T(8,128)}', space=vmem, size = 0x2000, scoped, tag = 'scratch operand']
  %s0 = inlined_call_operand.vmem [shape: bf16[16,32], index: 0, kind: input, shape index: {}]
  %s1 = inlined_call_operand.vmem [shape: bf16[32,64], index: 1, kind: input, shape index: {}]
  %s2 = inlined_call_operand.vmem [shape: f32[1,64], index: 2, kind: input, shape index: {}]
  %s3 = inlined_call_operand.vmem [shape: bf16[64,32], index: 3, kind: input, shape index: {}]
  %s4 = inlined_call_operand.vmem [shape: f32[1,32], index: 4, kind: input, shape index: {}]
  %s5 = inlined_call_operand.vmem [shape: f32[1,32], index: 5, kind: input, shape index: {}]
  %s6 = inlined_call_operand.vmem [shape: f32[1,32], index: 6, kind: input, shape index: {}]
  %s7 = inlined_call_operand.vmem [shape: bf16[16,32], index: 7, kind: output, shape index: {}]
  %s8 = sld [smem:[#allocation0]]
  $region46: #{_lambda_.14} parent=0
    _
  %s10 = ssub.s32 1, %s8
  %s11 = scalar_select 0, %s10, %s8
  // Predicated region
  $region2: #{_lambda_.14} parent=0 // pred_check
    _
  $region3: #{_lambda_.14} parent=0 // pred_check_branch
    %13 = sbr.rel (0) target = $region5
  $region4: #{_lambda_.14} parent=0 // pred_region
    _
  $region5: #{_lambda_.14} parent=0 // pred_fallthru
    _
  // Predicated region
  $region6: #{_lambda_.14} parent=0 // pred_check
    _
  $region7: #{_lambda_.14} parent=0 // pred_check_branch
    %15 = sbr.rel (0) target = $region9
  $region8: #{_lambda_.14} parent=0 // pred_region
    _
  $region9: #{_lambda_.14} parent=0 // pred_fallthru
    _
  // Predicated region
  $region10: #{_lambda_.14} parent=0 // pred_check
    _
  $region11: #{_lambda_.14} parent=0 // pred_check_branch
    %17 = sbr.rel (0) target = $region13
  $region12: #{_lambda_.14} parent=0 // pred_region
    _
  $region13: #{_lambda_.14} parent=0 // pred_fallthru
    _
  // Predicated region
  $region14: #{_lambda_.14} parent=0 // pred_check
    _
  $region15: #{_lambda_.14} parent=0 // pred_check_branch
    %19 = sbr.rel (0) target = $region17
  $region16: #{_lambda_.14} parent=0 // pred_region
    _
  $region17: #{_lambda_.14} parent=0 // pred_fallthru
    _
  // Predicated region
  $region18: #{_lambda_.14} parent=0 // pred_check
    _
  $region19: #{_lambda_.14} parent=0 // pred_check_branch
    %21 = sbr.rel (0) target = $region21
  $region20: #{_lambda_.14} parent=0 // pred_region
    _
  $region21: #{_lambda_.14} parent=0 // pred_fallthru
    _
  // Predicated region
  $region22: #{_lambda_.14} parent=0 // pred_check
    _
  $region23: #{_lambda_.14} parent=0 // pred_check_branch
    %23 = sbr.rel (0) target = $region25
  $region24: #{_lambda_.14} parent=0 // pred_region
    _
  $region25: #{_lambda_.14} parent=0 // pred_fallthru
    _
  // Predicated region
  $region26: #{_lambda_.14} parent=0 // pred_check
    _
  $region27: #{_lambda_.14} parent=0 // pred_check_branch
    %25 = sbr.rel (0) target = $region29
  $region28: #{_lambda_.14} parent=0 // pred_region
    _
  $region29: #{_lambda_.14} parent=0 // pred_fallthru
    _
  %p27 = scmp.eq.s32.totalorder 0, 0
  // Predicated region
  $region30: #{_lambda_.14} parent=0 // pred_check
    %p28 = pneg %p27
  $region31: #{_lambda_.14} parent=0 // pred_check_branch
    %30 = sbr.rel (%p28) target = $region33
  $region32: #{_lambda_.14} parent=0 // pred_region
    %vm31 = vcmask 261120
    %32 = vst.msk [vmem:[#allocation2] sm:$0xff] %vm31, 0.0
    %33 = vst.msk [vmem:[#allocation2 + $0x8] sm:$0xff] %vm31, 0.0
  $region33: #{_lambda_.14} parent=0 // pred_fallthru
    _
  %v34 = vld [vmem:[%s0] sm:$0xf]
  %v35 = vld [vmem:[%s0 + $0x4] sm:$0xf]
  %v36 = vld [vmem:[%s1] sm:$0xf]
  %v37 = vld [vmem:[%s1 + $0x4] sm:$0xf]
  %v38 = vld [vmem:[%s1 + $0x8] sm:$0xf]
  %v39 = vld [vmem:[%s1 + $0xc] sm:$0xf]
  %v40 = vld [vmem:[%s2] sm:$0x1]
  %v42 = vperm.slane %v40, 0
  %v46 = vunpack.c.l.b16 %v34
  %v47 = vunpack.c.l.b16 %v35
  %v48 = vpack.c.b16 %v47, %v46
  %v53 = vunpack.c.l.b16 %v36
  %v54 = vunpack.c.l.b16 %v37
  %v55 = vunpack.c.l.b16 %v38
  %v56 = vunpack.c.l.b16 %v39
  %v57 = vpack.c.b16 %v54, %v53
  %v58 = vpack.c.b16 %v56, %v55
  %vm61 = vcmask 261120
  %v63 = vsel %vm61, %v48, 0
  %65 = vmatpush.bf16.msra.mxu0 0
  %66 = vmatpush.bf16.msra.mxu0 0
  %67 = vmatpush.bf16.msra.mxu0 0
  %68 = vmatpush.bf16.msra.mxu0 0
  %69 = vmatpush.bf16.msra.mxu0 0
  %70 = vmatpush.bf16.msra.mxu0 0
  %71 = vmatpush.bf16.msra.mxu0 %v58
  %72 = vmatpush.bf16.msra.mxu0 %v57
  %73 = vmatmul.bf16.gmra.mxu0 %v63
  %v74 = vpop.f32.mrf.mxu0
  %v75 = vadd.f32 %v42, %v74
  %v76 = vpop.f32.mrf.mxu0
  %v77 = vadd.f32 %v42, %v76
  %78 = vdwg.mxu0
  %v79 = vmax.f32 %v75, 0.0
  %v80 = vmax.f32 %v77, 0.0
  %v81 = vld [vmem:[#allocation2] sm:$0xff]
  %v82 = vld [vmem:[#allocation2 + $0x8] sm:$0xff]
  %v83 = vpack.c.bf16 %v80, %v79
  %v84 = vld [vmem:[%s3] sm:$0xf]
  %v85 = vld [vmem:[%s3 + $0x4] sm:$0xf]
  %v86 = vld [vmem:[%s3 + $0x8] sm:$0xf]
  %v87 = vld [vmem:[%s3 + $0xc] sm:$0xf]
  %v88 = vld [vmem:[%s3 + $0x10] sm:$0xf]
  %v89 = vld [vmem:[%s3 + $0x14] sm:$0xf]
  %v90 = vld [vmem:[%s3 + $0x18] sm:$0xf]
  %v91 = vld [vmem:[%s3 + $0x1c] sm:$0xf]
  %v100 = vunpack.c.l.b16 %v84
  %v101 = vunpack.c.l.b16 %v85
  %v102 = vunpack.c.l.b16 %v86
  %v103 = vunpack.c.l.b16 %v87
  %v104 = vunpack.c.l.b16 %v88
  %v105 = vunpack.c.l.b16 %v89
  %v106 = vunpack.c.l.b16 %v90
  %v107 = vunpack.c.l.b16 %v91
  %v108 = vpack.c.b16 %v101, %v100
  %v109 = vpack.c.b16 %v103, %v102
  %v110 = vpack.c.b16 %v105, %v104
  %v111 = vpack.c.b16 %v107, %v106
  %vm116 = vcmask 523264
  %v118 = vsel %vm116, %v83, 0
  %120 = vmatpush.bf16.msra.mxu0 0
  %121 = vmatpush.bf16.msra.mxu0 0
  %122 = vmatpush.bf16.msra.mxu0 0
  %123 = vmatpush.bf16.msra.mxu0 0
  %124 = vmatpush.bf16.msra.mxu0 %v111
  %125 = vmatpush.bf16.msra.mxu0 %v110
  %126 = vmatpush.bf16.msra.mxu0 %v109
  %127 = vmatpush.bf16.msra.mxu0 %v108
  %128 = vmatmul.bf16.gmra.mxu0 %v118
  %v129 = vpop.f32.mrf.mxu0
  %v130 = vadd.f32 0.0, %v129
  %v131 = vpop.f32.mrf.mxu0
  %v132 = vadd.f32 0.0, %v131
  %133 = vdwg.mxu0
  %v134 = vadd.f32 %v81, %v130
  %v135 = vadd.f32 %v82, %v132
  %136 = vst.msk [vmem:[#allocation2] sm:$0xff] %vm61, %v134
  %137 = vst.msk [vmem:[#allocation2 + $0x8] sm:$0xff] %vm61, %v135
  // Predicated region
  $region34: #{_lambda_.14} parent=0 // pred_check
    %p138 = pneg %p27
  $region35: #{_lambda_.14} parent=0 // pred_check_branch
    %140 = sbr.rel (%p138) target = $region37
  $region36: #{_lambda_.14} parent=0 // pred_region
    %v141 = vld [vmem:[%s0] sm:$0xf]
    %v142 = vld [vmem:[%s0 + $0x4] sm:$0xf]
    %v143 = vunpack.c.l.bf16 %v141
    %v144 = vunpack.c.l.bf16 %v142
    %v145 = vld [vmem:[#allocation2] sm:$0xff]
    %v146 = vld [vmem:[#allocation2 + $0x8] sm:$0xff]
    %v147 = vadd.f32 %v143, %v145
    %v148 = vadd.f32 %v144, %v146
    %v149 = vld [vmem:[%s4] sm:$0x1]
    %v151 = vperm.slane %v149, 0
    %v153 = vadd.f32 %v147, %v151
    %v154 = vadd.f32 %v148, %v151
    %v155 = vsel %vm61, %v153, 0.0
    %156 = vadd.xlane.f32.xlu0 %v155
    %v157 = vpop.xlane.xlu0 %156
    %v158 = vsel %vm61, %v154, 0.0
    %159 = vadd.xlane.f32.xlu0 %v158
    %v160 = vpop.xlane.xlu0 %159
    %v161 = vrcp.pop 32.0
    %v162 = vmul.f32 32.0, %v161
    %v163 = vsub.f32 1.0, %v162
    %v164 = vmul.f32 %v161, %v163
    %v165 = vadd.f32 %v161, %v164
    %vm166 = vweird.f32 %v161
    %v167 = vsel %vm166, %v161, %v165
    %v168 = vmul.f32 %v157, %v167
    %v169 = vmul.f32 %v160, %v167
    %v170 = vsub.f32 %v153, %v168
    %v171 = vsub.f32 %v154, %v169
    %v172 = vmul.f32 %v170, %v170
    %v173 = vmul.f32 %v171, %v171
    %v174 = vsel %vm61, %v172, 0.0
    %175 = vadd.xlane.f32.xlu0 %v174
    %v176 = vpop.xlane.xlu0 %175
    %v177 = vsel %vm61, %v173, 0.0
    %178 = vadd.xlane.f32.xlu0 %v177
    %v179 = vpop.xlane.xlu0 %178
    %v180 = vmul.f32 %v176, %v167
    %v181 = vmul.f32 %v179, %v167
    %v182 = vadd.f32 %v180, 1e-05
    %v183 = vadd.f32 %v181, 1e-05
    %v184 = vrsqrt.pop %v182
    %v185 = vmul.f32 %v184, %v182
    %v186 = vmul.f32 %v185, %v184
    %v187 = vmul.f32 0.5, %v186
    %v188 = vsub.f32 1.5, %v187
    %v189 = vmul.f32 %v184, %v188
    %vm190 = vweird.f32 %v182
    %vm191 = vweird.f32 %v184
    %vm192 = vmor %vm190, %vm191
    %v193 = vsel %vm192, %v184, %v189
    %v194 = vrsqrt.pop %v183
    %v195 = vmul.f32 %v194, %v183
    %v196 = vmul.f32 %v195, %v194
    %v197 = vmul.f32 0.5, %v196
    %v198 = vsub.f32 1.5, %v197
    %v199 = vmul.f32 %v194, %v198
    %vm200 = vweird.f32 %v183
    %vm201 = vweird.f32 %v194
    %vm202 = vmor %vm200, %vm201
    %v203 = vsel %vm202, %v194, %v199
    %v204 = vmul.f32 %v170, %v193
    %v205 = vmul.f32 %v171, %v203
    %v206 = vld [vmem:[%s5] sm:$0x1]
    %v208 = vperm.slane %v206, 0
    %v210 = vmul.f32 %v204, %v208
    %v211 = vmul.f32 %v205, %v208
    %v212 = vld [vmem:[%s6] sm:$0x1]
    %v214 = vperm.slane %v212, 0
    %v216 = vadd.f32 %v210, %v214
    %v217 = vadd.f32 %v211, %v214
    %v218 = vpack.c.bf16 %v216, %v216
    %v219 = vpack.c.bf16 %v217, %v217
    %vm220 = vcmask 257024
    %221 = vst.msk [vmem:[%s7] sm:$0xf] %vm220, %v218
    %222 = vst.msk [vmem:[%s7 + $0x4] sm:$0xf] %vm220, %v219
  $region37: #{_lambda_.14} parent=0 // pred_fallthru
    _
  // Predicated region
  $region38: #{_lambda_.14} parent=0 // pred_check
    _
  $region39: #{_lambda_.14} parent=0 // pred_check_branch
    %224 = sbr.rel (0) target = $region41
  $region40: #{_lambda_.14} parent=0 // pred_region
    _
  $region41: #{_lambda_.14} parent=0 // pred_fallthru
    _
  // Predicated region
  $region42: #{_lambda_.14} parent=0 // pred_check
    _
  $region43: #{_lambda_.14} parent=0 // pred_check_branch
    %226 = sbr.rel (0) target = $region45
  $region44: #{_lambda_.14} parent=0 // pred_region
    _
  $region45: #{_lambda_.14} parent=0 // pred_fallthru
    _

// kernel: _lambda_.19
$region0: #{_lambda_.19}
  #allocation0 [shape = 'u32[]', space=smem, size = 0x4, offset = 0x4, fixed_abs, tag = 'smem constant byte address 0x4 - core index']
  #allocation1 [shape = 'u32[72,128]{1,0:T(1,128)}', space=vmem, size = 0x9000, scoped, tag = 'internal scratch']
  #allocation2 [shape = 'f32[16,32]{1,0:T(8,128)}', space=vmem, size = 0x2000, scoped, tag = 'scratch operand']
  %s0 = inlined_call_operand.vmem [shape: bf16[16,32], index: 0, kind: input, shape index: {}]
  %s1 = inlined_call_operand.vmem [shape: bf16[32,64], index: 1, kind: input, shape index: {}]
  %s2 = inlined_call_operand.vmem [shape: f32[1,64], index: 2, kind: input, shape index: {}]
  %s3 = inlined_call_operand.vmem [shape: bf16[64,32], index: 3, kind: input, shape index: {}]
  %s4 = inlined_call_operand.vmem [shape: f32[1,32], index: 4, kind: input, shape index: {}]
  %s5 = inlined_call_operand.vmem [shape: f32[1,32], index: 5, kind: input, shape index: {}]
  %s6 = inlined_call_operand.vmem [shape: f32[1,32], index: 6, kind: input, shape index: {}]
  %s7 = inlined_call_operand.vmem [shape: f32[1,32], index: 7, kind: input, shape index: {}]
  %s8 = inlined_call_operand.vmem [shape: f32[1,32], index: 8, kind: input, shape index: {}]
  %s9 = inlined_call_operand.hbm [shape: f32[16,32], index: 9, kind: output, shape index: {}]
  %s10 = sld [smem:[#allocation0]]
  $region54: #{_lambda_.19} parent=0
    _
  %s12 = ssub.s32 1, %s10
  %s13 = scalar_select 0, %s12, %s10
  $region1: #{_lambda_.19} parent=0
    #allocation3 [shape = 'u8[8192]{0}', space=vmem, size = 0x2000, scoped, tag = 'output window, operand 0, single buffered']
    #allocation4 [shape = 's32[1]{0}', space=sflag, size = 0x4, scoped, tag = 'scoped memory for _lambda_.19']
    %14 = vsyncpa [#allocation4], 0
    // Predicated region
    $region2: #{_lambda_.19} parent=1 // pred_check
      _
    $region3: #{_lambda_.19} parent=1 // pred_check_branch
      %16 = sbr.rel (0) target = $region5
    $region4: #{_lambda_.19} parent=1 // pred_region
      _
    $region5: #{_lambda_.19} parent=1 // pred_fallthru
      _
    // Predicated region
    $region6: #{_lambda_.19} parent=1 // pred_check
      _
    $region7: #{_lambda_.19} parent=1 // pred_check_branch
      %18 = sbr.rel (0) target = $region9
    $region8: #{_lambda_.19} parent=1 // pred_region
      _
    $region9: #{_lambda_.19} parent=1 // pred_fallthru
      _
    // Predicated region
    $region10: #{_lambda_.19} parent=1 // pred_check
      _
    $region11: #{_lambda_.19} parent=1 // pred_check_branch
      %20 = sbr.rel (0) target = $region13
    $region12: #{_lambda_.19} parent=1 // pred_region
      _
    $region13: #{_lambda_.19} parent=1 // pred_fallthru
      _
    // Predicated region
    $region14: #{_lambda_.19} parent=1 // pred_check
      _
    $region15: #{_lambda_.19} parent=1 // pred_check_branch
      %22 = sbr.rel (0) target = $region17
    $region16: #{_lambda_.19} parent=1 // pred_region
      _
    $region17: #{_lambda_.19} parent=1 // pred_fallthru
      _
    // Predicated region
    $region18: #{_lambda_.19} parent=1 // pred_check
      _
    $region19: #{_lambda_.19} parent=1 // pred_check_branch
      %24 = sbr.rel (0) target = $region21
    $region20: #{_lambda_.19} parent=1 // pred_region
      _
    $region21: #{_lambda_.19} parent=1 // pred_fallthru
      _
    // Predicated region
    $region22: #{_lambda_.19} parent=1 // pred_check
      _
    $region23: #{_lambda_.19} parent=1 // pred_check_branch
      %26 = sbr.rel (0) target = $region25
    $region24: #{_lambda_.19} parent=1 // pred_region
      _
    $region25: #{_lambda_.19} parent=1 // pred_fallthru
      _
    // Predicated region
    $region26: #{_lambda_.19} parent=1 // pred_check
      _
    $region27: #{_lambda_.19} parent=1 // pred_check_branch
      %28 = sbr.rel (0) target = $region29
    $region28: #{_lambda_.19} parent=1 // pred_region
      _
    $region29: #{_lambda_.19} parent=1 // pred_fallthru
      _
    // Predicated region
    $region30: #{_lambda_.19} parent=1 // pred_check
      _
    $region31: #{_lambda_.19} parent=1 // pred_check_branch
      %30 = sbr.rel (0) target = $region33
    $region32: #{_lambda_.19} parent=1 // pred_region
      _
    $region33: #{_lambda_.19} parent=1 // pred_fallthru
      _
    // Predicated region
    $region34: #{_lambda_.19} parent=1 // pred_check
      _
    $region35: #{_lambda_.19} parent=1 // pred_check_branch
      %32 = sbr.rel (0) target = $region37
    $region36: #{_lambda_.19} parent=1 // pred_region
      _
    $region37: #{_lambda_.19} parent=1 // pred_fallthru
      _
    %p34 = scmp.eq.s32.totalorder 0, 0
    // Predicated region
    $region38: #{_lambda_.19} parent=1 // pred_check
      %p35 = pneg %p34
    $region39: #{_lambda_.19} parent=1 // pred_check_branch
      %37 = sbr.rel (%p35) target = $region41
    $region40: #{_lambda_.19} parent=1 // pred_region
      %vm38 = vcmask 261120
      %39 = vst.msk [vmem:[#allocation2] sm:$0xff] %vm38, 0.0
      %40 = vst.msk [vmem:[#allocation2 + $0x8] sm:$0xff] %vm38, 0.0
    $region41: #{_lambda_.19} parent=1 // pred_fallthru
      _
    %v41 = vld [vmem:[%s0] sm:$0xf]
    %v42 = vld [vmem:[%s0 + $0x4] sm:$0xf]
    %v43 = vld [vmem:[%s1] sm:$0xf]
    %v44 = vld [vmem:[%s1 + $0x4] sm:$0xf]
    %v45 = vld [vmem:[%s1 + $0x8] sm:$0xf]
    %v46 = vld [vmem:[%s1 + $0xc] sm:$0xf]
    %v47 = vld [vmem:[%s2] sm:$0x1]
    %v49 = vperm.slane %v47, 0
    %v53 = vunpack.c.l.b16 %v41
    %v54 = vunpack.c.l.b16 %v42
    %v55 = vpack.c.b16 %v54, %v53
    %v60 = vunpack.c.l.b16 %v43
    %v61 = vunpack.c.l.b16 %v44
    %v62 = vunpack.c.l.b16 %v45
    %v63 = vunpack.c.l.b16 %v46
    %v64 = vpack.c.b16 %v61, %v60
    %v65 = vpack.c.b16 %v63, %v62
    %vm68 = vcmask 261120
    %v70 = vsel %vm68, %v55, 0
    %72 = vmatpush.bf16.msra.mxu0 0
    %73 = vmatpush.bf16.msra.mxu0 0
    %74 = vmatpush.bf16.msra.mxu0 0
    %75 = vmatpush.bf16.msra.mxu0 0
    %76 = vmatpush.bf16.msra.mxu0 0
    %77 = vmatpush.bf16.msra.mxu0 0
    %78 = vmatpush.bf16.msra.mxu0 %v65
    %79 = vmatpush.bf16.msra.mxu0 %v64
    %80 = vmatmul.bf16.gmra.mxu0 %v70
    %v81 = vpop.f32.mrf.mxu0
    %v82 = vadd.f32 %v49, %v81
    %v83 = vpop.f32.mrf.mxu0
    %v84 = vadd.f32 %v49, %v83
    %85 = vdwg.mxu0
    %v86 = vmax.f32 %v82, 0.0
    %v87 = vmax.f32 %v84, 0.0
    %v88 = vld [vmem:[#allocation2] sm:$0xff]
    %v89 = vld [vmem:[#allocation2 + $0x8] sm:$0xff]
    %v90 = vpack.c.bf16 %v87, %v86
    %v91 = vld [vmem:[%s3] sm:$0xf]
    %v92 = vld [vmem:[%s3 + $0x4] sm:$0xf]
    %v93 = vld [vmem:[%s3 + $0x8] sm:$0xf]
    %v94 = vld [vmem:[%s3 + $0xc] sm:$0xf]
    %v95 = vld [vmem:[%s3 + $0x10] sm:$0xf]
    %v96 = vld [vmem:[%s3 + $0x14] sm:$0xf]
    %v97 = vld [vmem:[%s3 + $0x18] sm:$0xf]
    %v98 = vld [vmem:[%s3 + $0x1c] sm:$0xf]
    %v107 = vunpack.c.l.b16 %v91
    %v108 = vunpack.c.l.b16 %v92
    %v109 = vunpack.c.l.b16 %v93
    %v110 = vunpack.c.l.b16 %v94
    %v111 = vunpack.c.l.b16 %v95
    %v112 = vunpack.c.l.b16 %v96
    %v113 = vunpack.c.l.b16 %v97
    %v114 = vunpack.c.l.b16 %v98
    %v115 = vpack.c.b16 %v108, %v107
    %v116 = vpack.c.b16 %v110, %v109
    %v117 = vpack.c.b16 %v112, %v111
    %v118 = vpack.c.b16 %v114, %v113
    %vm123 = vcmask 523264
    %v125 = vsel %vm123, %v90, 0
    %127 = vmatpush.bf16.msra.mxu0 0
    %128 = vmatpush.bf16.msra.mxu0 0
    %129 = vmatpush.bf16.msra.mxu0 0
    %130 = vmatpush.bf16.msra.mxu0 0
    %131 = vmatpush.bf16.msra.mxu0 %v118
    %132 = vmatpush.bf16.msra.mxu0 %v117
    %133 = vmatpush.bf16.msra.mxu0 %v116
    %134 = vmatpush.bf16.msra.mxu0 %v115
    %135 = vmatmul.bf16.gmra.mxu0 %v125
    %v136 = vpop.f32.mrf.mxu0
    %v137 = vadd.f32 0.0, %v136
    %v138 = vpop.f32.mrf.mxu0
    %v139 = vadd.f32 0.0, %v138
    %140 = vdwg.mxu0
    %v141 = vadd.f32 %v88, %v137
    %v142 = vadd.f32 %v89, %v139
    %143 = vst.msk [vmem:[#allocation2] sm:$0xff] %vm68, %v141
    %144 = vst.msk [vmem:[#allocation2 + $0x8] sm:$0xff] %vm68, %v142
    // Predicated region
    $region42: #{_lambda_.19} parent=1 // pred_check
      %p145 = pneg %p34
    $region43: #{_lambda_.19} parent=1 // pred_check_branch
      %147 = sbr.rel (%p145) target = $region45
    $region44: #{_lambda_.19} parent=1 // pred_region
      %v148 = vld [vmem:[%s0] sm:$0xf]
      %v149 = vld [vmem:[%s0 + $0x4] sm:$0xf]
      %v150 = vunpack.c.l.bf16 %v148
      %v151 = vunpack.c.l.bf16 %v149
      %v152 = vld [vmem:[#allocation2] sm:$0xff]
      %v153 = vld [vmem:[#allocation2 + $0x8] sm:$0xff]
      %v154 = vadd.f32 %v150, %v152
      %v155 = vadd.f32 %v151, %v153
      %v156 = vld [vmem:[%s4] sm:$0x1]
      %v158 = vperm.slane %v156, 0
      %v160 = vadd.f32 %v154, %v158
      %v161 = vadd.f32 %v155, %v158
      %v162 = vsel %vm68, %v160, 0.0
      %163 = vadd.xlane.f32.xlu0 %v162
      %v164 = vpop.xlane.xlu0 %163
      %v165 = vsel %vm68, %v161, 0.0
      %166 = vadd.xlane.f32.xlu0 %v165
      %v167 = vpop.xlane.xlu0 %166
      %v168 = vrcp.pop 32.0
      %v169 = vmul.f32 32.0, %v168
      %v170 = vsub.f32 1.0, %v169
      %v171 = vmul.f32 %v168, %v170
      %v172 = vadd.f32 %v168, %v171
      %vm173 = vweird.f32 %v168
      %v174 = vsel %vm173, %v168, %v172
      %v175 = vmul.f32 %v164, %v174
      %v176 = vmul.f32 %v167, %v174
      %v177 = vsub.f32 %v160, %v175
      %v178 = vsub.f32 %v161, %v176
      %v179 = vmul.f32 %v177, %v177
      %v180 = vmul.f32 %v178, %v178
      %v181 = vsel %vm68, %v179, 0.0
      %182 = vadd.xlane.f32.xlu0 %v181
      %v183 = vpop.xlane.xlu0 %182
      %v184 = vsel %vm68, %v180, 0.0
      %185 = vadd.xlane.f32.xlu0 %v184
      %v186 = vpop.xlane.xlu0 %185
      %v187 = vmul.f32 %v183, %v174
      %v188 = vmul.f32 %v186, %v174
      %v189 = vadd.f32 %v187, 1e-05
      %v190 = vadd.f32 %v188, 1e-05
      %v191 = vrsqrt.pop %v189
      %v192 = vmul.f32 %v191, %v189
      %v193 = vmul.f32 %v192, %v191
      %v194 = vmul.f32 0.5, %v193
      %v195 = vsub.f32 1.5, %v194
      %v196 = vmul.f32 %v191, %v195
      %vm197 = vweird.f32 %v189
      %vm198 = vweird.f32 %v191
      %vm199 = vmor %vm197, %vm198
      %v200 = vsel %vm199, %v191, %v196
      %v201 = vrsqrt.pop %v190
      %v202 = vmul.f32 %v201, %v190
      %v203 = vmul.f32 %v202, %v201
      %v204 = vmul.f32 0.5, %v203
      %v205 = vsub.f32 1.5, %v204
      %v206 = vmul.f32 %v201, %v205
      %vm207 = vweird.f32 %v190
      %vm208 = vweird.f32 %v201
      %vm209 = vmor %vm207, %vm208
      %v210 = vsel %vm209, %v201, %v206
      %v211 = vmul.f32 %v177, %v200
      %v212 = vmul.f32 %v178, %v210
      %v213 = vld [vmem:[%s5] sm:$0x1]
      %v215 = vperm.slane %v213, 0
      %v217 = vmul.f32 %v211, %v215
      %v218 = vmul.f32 %v212, %v215
      %v219 = vld [vmem:[%s6] sm:$0x1]
      %v221 = vperm.slane %v219, 0
      %v223 = vadd.f32 %v217, %v221
      %v224 = vadd.f32 %v218, %v221
      %v225 = vsel %vm68, %v223, 0.0
      %226 = vadd.xlane.f32.xlu0 %v225
      %v227 = vpop.xlane.xlu0 %226
      %v228 = vsel %vm68, %v224, 0.0
      %229 = vadd.xlane.f32.xlu0 %v228
      %v230 = vpop.xlane.xlu0 %229
      %v231 = vmul.f32 %v227, %v174
      %v232 = vmul.f32 %v230, %v174
      %v233 = vsub.f32 %v223, %v231
      %v234 = vsub.f32 %v224, %v232
      %v235 = vmul.f32 %v233, %v233
      %v236 = vmul.f32 %v234, %v234
      %v237 = vsel %vm68, %v235, 0.0
      %238 = vadd.xlane.f32.xlu0 %v237
      %v239 = vpop.xlane.xlu0 %238
      %v240 = vsel %vm68, %v236, 0.0
      %241 = vadd.xlane.f32.xlu0 %v240
      %v242 = vpop.xlane.xlu0 %241
      %v243 = vmul.f32 %v239, %v174
      %v244 = vmul.f32 %v242, %v174
      %v245 = vadd.f32 %v243, 1e-05
      %v246 = vadd.f32 %v244, 1e-05
      %v247 = vrsqrt.pop %v245
      %v248 = vmul.f32 %v247, %v245
      %v249 = vmul.f32 %v248, %v247
      %v250 = vmul.f32 0.5, %v249
      %v251 = vsub.f32 1.5, %v250
      %v252 = vmul.f32 %v247, %v251
      %vm253 = vweird.f32 %v245
      %vm254 = vweird.f32 %v247
      %vm255 = vmor %vm253, %vm254
      %v256 = vsel %vm255, %v247, %v252
      %v257 = vrsqrt.pop %v246
      %v258 = vmul.f32 %v257, %v246
      %v259 = vmul.f32 %v258, %v257
      %v260 = vmul.f32 0.5, %v259
      %v261 = vsub.f32 1.5, %v260
      %v262 = vmul.f32 %v257, %v261
      %vm263 = vweird.f32 %v246
      %vm264 = vweird.f32 %v257
      %vm265 = vmor %vm263, %vm264
      %v266 = vsel %vm265, %v257, %v262
      %v267 = vmul.f32 %v233, %v256
      %v268 = vmul.f32 %v234, %v266
      %v269 = vld [vmem:[%s7] sm:$0x1]
      %v271 = vperm.slane %v269, 0
      %v273 = vmul.f32 %v267, %v271
      %v274 = vmul.f32 %v268, %v271
      %v275 = vld [vmem:[%s8] sm:$0x1]
      %v277 = vperm.slane %v275, 0
      %v279 = vadd.f32 %v273, %v277
      %v280 = vadd.f32 %v274, %v277
      %281 = vst.msk [vmem:[#allocation3] sm:$0xff] %vm68, %v279
      %282 = vst.msk [vmem:[#allocation3 + $0x8] sm:$0xff] %vm68, %v280
    $region45: #{_lambda_.19} parent=1 // pred_fallthru
      _
    // Predicated region
    $region46: #{_lambda_.19} parent=1 // pred_check
      _
    $region47: #{_lambda_.19} parent=1 // pred_check_branch
      %284 = sbr.rel (0) target = $region49
    $region48: #{_lambda_.19} parent=1 // pred_region
      %286 = vsyncadd [#allocation4], 0
      %s287 = sshll.u32 [#allocation3], 4
      %s288 = int_to_ptr.vmem [resolvable:$true] %s287
      %s289 = sshll.u32 %s9, 4
      %s290 = int_to_ptr.hbm [resolvable:$true] %s289
      %295 = dma.vmem_to_hbm [thread:$0]  %s288, 256, %s290, [#allocation4], 128, 128, 8
    $region49: #{_lambda_.19} parent=1 // pred_fallthru
      _
    // Predicated region
    $region50: #{_lambda_.19} parent=1 // pred_check
      _
    $region51: #{_lambda_.19} parent=1 // pred_check_branch
      %297 = sbr.rel (0) target = $region53
    $region52: #{_lambda_.19} parent=1 // pred_region
      %299 = dma.done [#allocation4], 256
    $region53: #{_lambda_.19} parent=1 // pred_fallthru
      _
    %300 = vsyncpa [#allocation4], 1

</llo_original>
